<compile_context>
chip_gen: v6e
topology: v6e:2x2x1
jax: 0.10.0
libtpu: 0.0.40
codegen_flags: <defaults>
</compile_context>

<pallas_src>
import math
import jax
import jax.numpy as jnp
from jax.experimental import pallas as pl
from jax.experimental.pallas import tpu as pltpu  # noqa: F401 (TPU backend)

# ---- hyperparameters (mirror Model.__init__ defaults, small shapes) ----
N_OBJECTS = 50
N_RELATIONSHIPS = 10
EMB_DIM = 32
NORM = 2          # TODO(synk): only the p=2 norm is implemented in the kernel.
MARGIN = 1.0
C_REG = 0.25
EPS = 1e-4
BATCH = 8
OUT_LANES = 128   # lane-dense packed-output width


def _transh_kernel(correct_ref, corrupted_ref, obj_ref, rel_ref, proj_ref, out_ref):
    correct = correct_ref[...]      # (B, 3) int32
    corrupted = corrupted_ref[...]  # (B, 3) int32
    obj = obj_ref[...]              # (N_OBJECTS, D) f32
    rel = rel_ref[...]              # (N_REL, D) f32
    proj = proj_ref[...]            # (N_REL, D) f32

    B = correct.shape[0]

    def gather_rows(table, idx):
        # Exact in-VMEM gather: one-hot select over the row axis, then reduce.
        # table: (N, D) f32, idx: (B, 1) int32  ->  (B, D) f32
        n, d = table.shape
        row_ids = jax.lax.broadcasted_iota(jnp.int32, (B, n, d), 1)
        sel = row_ids == idx[:, :, None]                  # (B, N, D) bool
        picked = jnp.where(sel, table[None, :, :], 0.0)   # single hit per (b, d)
        return jnp.sum(picked, axis=1)                    # exact row pick

    h = gather_rows(obj, correct[:, 0:1])
    t = gather_rows(obj, correct[:, 2:3])
    ch = gather_rows(obj, corrupted[:, 0:1])
    ct = gather_rows(obj, corrupted[:, 2:3])
    w = gather_rows(proj, correct[:, 1:2])
    l = gather_rows(rel, correct[:, 1:2])

    def energy(hh, tt):
        # ||h + l - t - w * <(h - t), w>||_2, kept as (B, 1)
        p = jnp.sum((hh - tt) * w, axis=-1, keepdims=True)
        d = hh + l - tt - w * p
        return jnp.sqrt(jnp.sum(d * d, axis=-1, keepdims=True))

    E = energy(h, t)      # (B, 1)
    cE = energy(ch, ct)   # (B, 1)

    # MarginRankingLoss(margin, reduction='none') with target = -1:
    #   loss = relu(-(-1) * (E - cE) + margin) = relu(E - cE + margin)
    margin_loss = jnp.maximum(E - cE + MARGIN, 0.0)

    # regularizers
    reg_h = C_REG * jnp.maximum(jnp.sum(h * h, axis=-1, keepdims=True) - 1.0, 0.0)
    reg_t = C_REG * jnp.maximum(jnp.sum(t * t, axis=-1, keepdims=True) - 1.0, 0.0)
    wl = jnp.sum(w * l, axis=-1, keepdims=True)
    l_norm_sq = jnp.sum(l * l, axis=-1, keepdims=True)
    reg_wl = C_REG * jnp.maximum(
        wl * wl * pl.reciprocal(l_norm_sq, approx=False) - EPS, 0.0)

    loss = margin_loss + reg_h + reg_t + reg_wl   # (B, 1)

    # Pack the three results lane-dense into one (B, 128) slab:
    #   lane 0 = loss, lane 1 = E, lane 2 = cE, remaining lanes zero.
    lane = jax.lax.broadcasted_iota(jnp.int32, (B, OUT_LANES), 1)
    packed = (jnp.where(lane == 0, loss, 0.0)
              + jnp.where(lane == 1, E, 0.0)
              + jnp.where(lane == 2, cE, 0.0))
    out_ref[...] = packed


@jax.jit
def transh_forward(correct, corrupted, object_emb, rel_emb, rel_proj):
    """correct / corrupted: (B, 3) int32 triples. Returns (loss, E, cE), each (B,)."""
    B = correct.shape[0]

    def full(shape):
        return pl.BlockSpec(shape, lambda: (0,) * len(shape))

    packed = pl.pallas_call(
        _transh_kernel,
        out_shape=jax.ShapeDtypeStruct((B, OUT_LANES), jnp.float32),
        grid=(),
        in_specs=[
            full(correct.shape),
            full(corrupted.shape),
            full(object_emb.shape),
            full(rel_emb.shape),
            full(rel_proj.shape),
        ],
        out_specs=full((B, OUT_LANES)),
    )(correct, corrupted, object_emb, rel_emb, rel_proj)

    return packed[:, 0], packed[:, 1], packed[:, 2]


def init_params(key):
    """Deterministic parameter init mirroring Model.__init__."""
    k1, k2, k3 = jax.random.split(key, 3)
    bound = 6.0 / math.sqrt(EMB_DIM)
    object_emb = jax.random.uniform(
        k1, (N_OBJECTS, EMB_DIM), jnp.float32, minval=-bound, maxval=bound)
    rel_emb = jax.random.uniform(
        k2, (N_RELATIONSHIPS, EMB_DIM), jnp.float32, minval=-bound, maxval=bound)
    # relationship embedding is L2-normalized row-wise at init
    rel_emb = rel_emb / jnp.linalg.norm(rel_emb, ord=NORM, axis=1, keepdims=True)
    rel_proj = jax.random.uniform(
        k3, (N_RELATIONSHIPS, EMB_DIM), jnp.float32, minval=-bound, maxval=bound)
    return object_emb, rel_emb, rel_proj


def reference_forward(correct, corrupted, object_emb, rel_emb, rel_proj):
    """Pure-JAX reference of the PyTorch forward, for sanity checking."""
    h = object_emb[correct[:, 0]]
    l = rel_emb[correct[:, 1]]
    t = object_emb[correct[:, 2]]
    ch = object_emb[corrupted[:, 0]]
    ct = object_emb[corrupted[:, 2]]
    w = rel_proj[correct[:, 1]]

    def energy(hh, tt):
        proj = jnp.sum((hh - tt) * w, axis=-1, keepdims=True)
        return jnp.linalg.norm(hh + l - tt - w * proj, ord=NORM, axis=-1)

    E = energy(h, t)
    cE = energy(ch, ct)
    loss = jnp.maximum(E - cE + MARGIN, 0.0)
    reg_h = C_REG * jnp.maximum(jnp.sum(h * h, axis=1) - 1.0, 0.0)
    reg_t = C_REG * jnp.maximum(jnp.sum(t * t, axis=1) - 1.0, 0.0)
    reg_wl = C_REG * jnp.maximum(
        jnp.sum(w * l, axis=1) ** 2 / jnp.sum(l * l, axis=1) - EPS, 0.0)
    return loss + reg_h + reg_t + reg_wl, E, cE


if __name__ == "__main__":
    key = jax.random.PRNGKey(0)
    kp, kc1, kc2, kr = jax.random.split(key, 4)

    object_emb, rel_emb, rel_proj = init_params(kp)

    # correct / corrupted index triples (head, relation, tail)
    heads = jax.random.randint(kc1, (BATCH,), 0, N_OBJECTS)
    tails = jax.random.randint(kc2, (BATCH,), 0, N_OBJECTS)
    rels = jax.random.randint(kr, (BATCH,), 0, N_RELATIONSHIPS)
    correct = jnp.stack([heads, rels, tails], axis=1).astype(jnp.int32)

    c_heads = (heads + 7) % N_OBJECTS
    c_tails = (tails + 13) % N_OBJECTS
    corrupted = jnp.stack([c_heads, rels, c_tails], axis=1).astype(jnp.int32)

    loss, E, cE = transh_forward(correct, corrupted, object_emb, rel_emb, rel_proj)
    jax.block_until_ready((loss, E, cE))

    # sanity check vs pure-JAX reference
    loss_r, E_r, cE_r = reference_forward(correct, corrupted, object_emb, rel_emb, rel_proj)
    assert jnp.allclose(loss, loss_r, atol=1e-5, rtol=1e-5)
    assert jnp.allclose(E, E_r, atol=1e-5, rtol=1e-5)
    assert jnp.allclose(cE, cE_r, atol=1e-5, rtol=1e-5)

    print("KERNEL_OK")
</pallas_src>

<mosaic_0001>
module attributes {stable_mosaic.version = 11 : i64} {
  func.func @_transh_kernel(%arg0: memref<8x3xi32, #tpu.memory_space<vmem>>, %arg1: memref<8x3xi32, #tpu.memory_space<vmem>>, %arg2: memref<50x32xf32, #tpu.memory_space<vmem>>, %arg3: memref<10x32xf32, #tpu.memory_space<vmem>>, %arg4: memref<10x32xf32, #tpu.memory_space<vmem>>, %arg5: memref<8x128xf32, #tpu.memory_space<vmem>>) attributes {dimension_semantics = [], scalar_prefetch = 0 : i64, scratch_operands = 0 : i64, tpu.core_type = #tpu.core_type<tc>} {
    %c0 = arith.constant 0 : index
    %c0_0 = arith.constant 0 : index
    %0 = vector.load %arg0[%c0, %c0_0] : memref<8x3xi32, #tpu.memory_space<vmem>>, vector<8x3xi32>
    %c0_1 = arith.constant 0 : index
    %c0_2 = arith.constant 0 : index
    %1 = vector.load %arg1[%c0_1, %c0_2] : memref<8x3xi32, #tpu.memory_space<vmem>>, vector<8x3xi32>
    %c0_3 = arith.constant 0 : index
    %c0_4 = arith.constant 0 : index
    %2 = vector.load %arg2[%c0_3, %c0_4] : memref<50x32xf32, #tpu.memory_space<vmem>>, vector<50x32xf32>
    %c0_5 = arith.constant 0 : index
    %c0_6 = arith.constant 0 : index
    %3 = vector.load %arg3[%c0_5, %c0_6] : memref<10x32xf32, #tpu.memory_space<vmem>>, vector<10x32xf32>
    %c0_7 = arith.constant 0 : index
    %c0_8 = arith.constant 0 : index
    %4 = vector.load %arg4[%c0_7, %c0_8] : memref<10x32xf32, #tpu.memory_space<vmem>>, vector<10x32xf32>
    %5 = vector.extract_strided_slice %0 {offsets = [0, 0], sizes = [8, 1], strides = [1, 1]} : vector<8x3xi32> to vector<8x1xi32>
    %6 = tpu.iota {dimensions = array<i32: 1>} : vector<8x50x32xi32>
    %7 = vector.shape_cast %5 : vector<8x1xi32> to vector<8x1x1xi32>
    %8 = vector.broadcast %7 : vector<8x1x1xi32> to vector<8x50x32xi32>
    %9 = arith.cmpi eq, %6, %8 : vector<8x50x32xi32>
    %10 = vector.shape_cast %2 : vector<50x32xf32> to vector<1x50x32xf32>
    %cst = arith.constant 0.000000e+00 : f32
    %11 = vector.shape_cast %10 : vector<1x50x32xf32> to vector<1x50x32xf32>
    %12 = vector.broadcast %11 : vector<1x50x32xf32> to vector<8x50x32xf32>
    %13 = vector.broadcast %cst : f32 to vector<8x50x32xf32>
    %14 = arith.select %9, %12, %13 : vector<8x50x32xi1>, vector<8x50x32xf32>
    %cst_9 = arith.constant dense<0.000000e+00> : vector<8x32xf32>
    %15 = vector.multi_reduction <add>, %14, %cst_9 [1] : vector<8x50x32xf32> to vector<8x32xf32>
    %16 = vector.extract_strided_slice %0 {offsets = [0, 2], sizes = [8, 1], strides = [1, 1]} : vector<8x3xi32> to vector<8x1xi32>
    %17 = tpu.iota {dimensions = array<i32: 1>} : vector<8x50x32xi32>
    %18 = vector.shape_cast %16 : vector<8x1xi32> to vector<8x1x1xi32>
    %19 = vector.broadcast %18 : vector<8x1x1xi32> to vector<8x50x32xi32>
    %20 = arith.cmpi eq, %17, %19 : vector<8x50x32xi32>
    %21 = vector.shape_cast %2 : vector<50x32xf32> to vector<1x50x32xf32>
    %cst_10 = arith.constant 0.000000e+00 : f32
    %22 = vector.shape_cast %21 : vector<1x50x32xf32> to vector<1x50x32xf32>
    %23 = vector.broadcast %22 : vector<1x50x32xf32> to vector<8x50x32xf32>
    %24 = vector.broadcast %cst_10 : f32 to vector<8x50x32xf32>
    %25 = arith.select %20, %23, %24 : vector<8x50x32xi1>, vector<8x50x32xf32>
    %cst_11 = arith.constant dense<0.000000e+00> : vector<8x32xf32>
    %26 = vector.multi_reduction <add>, %25, %cst_11 [1] : vector<8x50x32xf32> to vector<8x32xf32>
    %27 = vector.extract_strided_slice %1 {offsets = [0, 0], sizes = [8, 1], strides = [1, 1]} : vector<8x3xi32> to vector<8x1xi32>
    %28 = tpu.iota {dimensions = array<i32: 1>} : vector<8x50x32xi32>
    %29 = vector.shape_cast %27 : vector<8x1xi32> to vector<8x1x1xi32>
    %30 = vector.broadcast %29 : vector<8x1x1xi32> to vector<8x50x32xi32>
    %31 = arith.cmpi eq, %28, %30 : vector<8x50x32xi32>
    %32 = vector.shape_cast %2 : vector<50x32xf32> to vector<1x50x32xf32>
    %cst_12 = arith.constant 0.000000e+00 : f32
    %33 = vector.shape_cast %32 : vector<1x50x32xf32> to vector<1x50x32xf32>
    %34 = vector.broadcast %33 : vector<1x50x32xf32> to vector<8x50x32xf32>
    %35 = vector.broadcast %cst_12 : f32 to vector<8x50x32xf32>
    %36 = arith.select %31, %34, %35 : vector<8x50x32xi1>, vector<8x50x32xf32>
    %cst_13 = arith.constant dense<0.000000e+00> : vector<8x32xf32>
    %37 = vector.multi_reduction <add>, %36, %cst_13 [1] : vector<8x50x32xf32> to vector<8x32xf32>
    %38 = vector.extract_strided_slice %1 {offsets = [0, 2], sizes = [8, 1], strides = [1, 1]} : vector<8x3xi32> to vector<8x1xi32>
    %39 = tpu.iota {dimensions = array<i32: 1>} : vector<8x50x32xi32>
    %40 = vector.shape_cast %38 : vector<8x1xi32> to vector<8x1x1xi32>
    %41 = vector.broadcast %40 : vector<8x1x1xi32> to vector<8x50x32xi32>
    %42 = arith.cmpi eq, %39, %41 : vector<8x50x32xi32>
    %43 = vector.shape_cast %2 : vector<50x32xf32> to vector<1x50x32xf32>
    %cst_14 = arith.constant 0.000000e+00 : f32
    %44 = vector.shape_cast %43 : vector<1x50x32xf32> to vector<1x50x32xf32>
    %45 = vector.broadcast %44 : vector<1x50x32xf32> to vector<8x50x32xf32>
    %46 = vector.broadcast %cst_14 : f32 to vector<8x50x32xf32>
    %47 = arith.select %42, %45, %46 : vector<8x50x32xi1>, vector<8x50x32xf32>
    %cst_15 = arith.constant dense<0.000000e+00> : vector<8x32xf32>
    %48 = vector.multi_reduction <add>, %47, %cst_15 [1] : vector<8x50x32xf32> to vector<8x32xf32>
    %49 = vector.extract_strided_slice %0 {offsets = [0, 1], sizes = [8, 1], strides = [1, 1]} : vector<8x3xi32> to vector<8x1xi32>
    %50 = tpu.iota {dimensions = array<i32: 1>} : vector<8x10x32xi32>
    %51 = vector.shape_cast %49 : vector<8x1xi32> to vector<8x1x1xi32>
    %52 = vector.broadcast %51 : vector<8x1x1xi32> to vector<8x10x32xi32>
    %53 = arith.cmpi eq, %50, %52 : vector<8x10x32xi32>
    %54 = vector.shape_cast %4 : vector<10x32xf32> to vector<1x10x32xf32>
    %cst_16 = arith.constant 0.000000e+00 : f32
    %55 = vector.shape_cast %54 : vector<1x10x32xf32> to vector<1x10x32xf32>
    %56 = vector.broadcast %55 : vector<1x10x32xf32> to vector<8x10x32xf32>
    %57 = vector.broadcast %cst_16 : f32 to vector<8x10x32xf32>
    %58 = arith.select %53, %56, %57 : vector<8x10x32xi1>, vector<8x10x32xf32>
    %cst_17 = arith.constant dense<0.000000e+00> : vector<8x32xf32>
    %59 = vector.multi_reduction <add>, %58, %cst_17 [1] : vector<8x10x32xf32> to vector<8x32xf32>
    %60 = vector.extract_strided_slice %0 {offsets = [0, 1], sizes = [8, 1], strides = [1, 1]} : vector<8x3xi32> to vector<8x1xi32>
    %61 = tpu.iota {dimensions = array<i32: 1>} : vector<8x10x32xi32>
    %62 = vector.shape_cast %60 : vector<8x1xi32> to vector<8x1x1xi32>
    %63 = vector.broadcast %62 : vector<8x1x1xi32> to vector<8x10x32xi32>
    %64 = arith.cmpi eq, %61, %63 : vector<8x10x32xi32>
    %65 = vector.shape_cast %3 : vector<10x32xf32> to vector<1x10x32xf32>
    %cst_18 = arith.constant 0.000000e+00 : f32
    %66 = vector.shape_cast %65 : vector<1x10x32xf32> to vector<1x10x32xf32>
    %67 = vector.broadcast %66 : vector<1x10x32xf32> to vector<8x10x32xf32>
    %68 = vector.broadcast %cst_18 : f32 to vector<8x10x32xf32>
    %69 = arith.select %64, %67, %68 : vector<8x10x32xi1>, vector<8x10x32xf32>
    %cst_19 = arith.constant dense<0.000000e+00> : vector<8x32xf32>
    %70 = vector.multi_reduction <add>, %69, %cst_19 [1] : vector<8x10x32xf32> to vector<8x32xf32>
    %71 = arith.subf %15, %26 : vector<8x32xf32>
    %72 = arith.mulf %71, %59 : vector<8x32xf32>
    %cst_20 = arith.constant dense<0.000000e+00> : vector<8xf32>
    %73 = vector.multi_reduction <add>, %72, %cst_20 [1] : vector<8x32xf32> to vector<8xf32>
    %74 = vector.shape_cast %73 : vector<8xf32> to vector<8x1xf32>
    %75 = arith.addf %15, %70 : vector<8x32xf32>
    %76 = arith.subf %75, %26 : vector<8x32xf32>
    %77 = vector.broadcast %74 : vector<8x1xf32> to vector<8x32xf32>
    %78 = arith.mulf %59, %77 : vector<8x32xf32>
    %79 = arith.subf %76, %78 : vector<8x32xf32>
    %80 = arith.mulf %79, %79 : vector<8x32xf32>
    %cst_21 = arith.constant dense<0.000000e+00> : vector<8xf32>
    %81 = vector.multi_reduction <add>, %80, %cst_21 [1] : vector<8x32xf32> to vector<8xf32>
    %82 = vector.shape_cast %81 : vector<8xf32> to vector<8x1xf32>
    %83 = math.sqrt %82 : vector<8x1xf32>
    %84 = arith.subf %37, %48 : vector<8x32xf32>
    %85 = arith.mulf %84, %59 : vector<8x32xf32>
    %cst_22 = arith.constant dense<0.000000e+00> : vector<8xf32>
    %86 = vector.multi_reduction <add>, %85, %cst_22 [1] : vector<8x32xf32> to vector<8xf32>
    %87 = vector.shape_cast %86 : vector<8xf32> to vector<8x1xf32>
    %88 = arith.addf %37, %70 : vector<8x32xf32>
    %89 = arith.subf %88, %48 : vector<8x32xf32>
    %90 = vector.broadcast %87 : vector<8x1xf32> to vector<8x32xf32>
    %91 = arith.mulf %59, %90 : vector<8x32xf32>
    %92 = arith.subf %89, %91 : vector<8x32xf32>
    %93 = arith.mulf %92, %92 : vector<8x32xf32>
    %cst_23 = arith.constant dense<0.000000e+00> : vector<8xf32>
    %94 = vector.multi_reduction <add>, %93, %cst_23 [1] : vector<8x32xf32> to vector<8xf32>
    %95 = vector.shape_cast %94 : vector<8xf32> to vector<8x1xf32>
    %96 = math.sqrt %95 : vector<8x1xf32>
    %97 = arith.subf %83, %96 : vector<8x1xf32>
    %cst_24 = arith.constant 1.000000e+00 : f32
    %98 = vector.broadcast %cst_24 : f32 to vector<8x1xf32>
    %99 = arith.addf %97, %98 : vector<8x1xf32>
    %cst_25 = arith.constant 0.000000e+00 : f32
    %100 = vector.broadcast %cst_25 : f32 to vector<8x1xf32>
    %101 = arith.maximumf %99, %100 : vector<8x1xf32>
    %102 = arith.mulf %15, %15 : vector<8x32xf32>
    %cst_26 = arith.constant dense<0.000000e+00> : vector<8xf32>
    %103 = vector.multi_reduction <add>, %102, %cst_26 [1] : vector<8x32xf32> to vector<8xf32>
    %104 = vector.shape_cast %103 : vector<8xf32> to vector<8x1xf32>
    %cst_27 = arith.constant 1.000000e+00 : f32
    %105 = vector.broadcast %cst_27 : f32 to vector<8x1xf32>
    %106 = arith.subf %104, %105 : vector<8x1xf32>
    %cst_28 = arith.constant 0.000000e+00 : f32
    %107 = vector.broadcast %cst_28 : f32 to vector<8x1xf32>
    %108 = arith.maximumf %106, %107 : vector<8x1xf32>
    %cst_29 = arith.constant 2.500000e-01 : f32
    %109 = vector.broadcast %cst_29 : f32 to vector<8x1xf32>
    %110 = arith.mulf %109, %108 : vector<8x1xf32>
    %111 = arith.mulf %26, %26 : vector<8x32xf32>
    %cst_30 = arith.constant dense<0.000000e+00> : vector<8xf32>
    %112 = vector.multi_reduction <add>, %111, %cst_30 [1] : vector<8x32xf32> to vector<8xf32>
    %113 = vector.shape_cast %112 : vector<8xf32> to vector<8x1xf32>
    %cst_31 = arith.constant 1.000000e+00 : f32
    %114 = vector.broadcast %cst_31 : f32 to vector<8x1xf32>
    %115 = arith.subf %113, %114 : vector<8x1xf32>
    %cst_32 = arith.constant 0.000000e+00 : f32
    %116 = vector.broadcast %cst_32 : f32 to vector<8x1xf32>
    %117 = arith.maximumf %115, %116 : vector<8x1xf32>
    %cst_33 = arith.constant 2.500000e-01 : f32
    %118 = vector.broadcast %cst_33 : f32 to vector<8x1xf32>
    %119 = arith.mulf %118, %117 : vector<8x1xf32>
    %120 = arith.mulf %59, %70 : vector<8x32xf32>
    %cst_34 = arith.constant dense<0.000000e+00> : vector<8xf32>
    %121 = vector.multi_reduction <add>, %120, %cst_34 [1] : vector<8x32xf32> to vector<8xf32>
    %122 = vector.shape_cast %121 : vector<8xf32> to vector<8x1xf32>
    %123 = arith.mulf %70, %70 : vector<8x32xf32>
    %cst_35 = arith.constant dense<0.000000e+00> : vector<8xf32>
    %124 = vector.multi_reduction <add>, %123, %cst_35 [1] : vector<8x32xf32> to vector<8xf32>
    %125 = vector.shape_cast %124 : vector<8xf32> to vector<8x1xf32>
    %126 = arith.mulf %122, %122 : vector<8x1xf32>
    %127 = tpu.reciprocal %125 : vector<8x1xf32> -> vector<8x1xf32>
    %128 = arith.mulf %126, %127 : vector<8x1xf32>
    %cst_36 = arith.constant 9.99999974E-5 : f32
    %129 = vector.broadcast %cst_36 : f32 to vector<8x1xf32>
    %130 = arith.subf %128, %129 : vector<8x1xf32>
    %cst_37 = arith.constant 0.000000e+00 : f32
    %131 = vector.broadcast %cst_37 : f32 to vector<8x1xf32>
    %132 = arith.maximumf %130, %131 : vector<8x1xf32>
    %cst_38 = arith.constant 2.500000e-01 : f32
    %133 = vector.broadcast %cst_38 : f32 to vector<8x1xf32>
    %134 = arith.mulf %133, %132 : vector<8x1xf32>
    %135 = arith.addf %101, %110 : vector<8x1xf32>
    %136 = arith.addf %135, %119 : vector<8x1xf32>
    %137 = arith.addf %136, %134 : vector<8x1xf32>
    %138 = tpu.iota {dimensions = array<i32: 1>} : vector<8x128xi32>
    %c0_i32 = arith.constant 0 : i32
    %139 = vector.broadcast %c0_i32 : i32 to vector<8x128xi32>
    %140 = arith.cmpi eq, %138, %139 : vector<8x128xi32>
    %cst_39 = arith.constant 0.000000e+00 : f32
    %141 = vector.shape_cast %137 : vector<8x1xf32> to vector<8x1xf32>
    %142 = vector.broadcast %141 : vector<8x1xf32> to vector<8x128xf32>
    %143 = vector.broadcast %cst_39 : f32 to vector<8x128xf32>
    %144 = arith.select %140, %142, %143 : vector<8x128xi1>, vector<8x128xf32>
    %c1_i32 = arith.constant 1 : i32
    %145 = vector.broadcast %c1_i32 : i32 to vector<8x128xi32>
    %146 = arith.cmpi eq, %138, %145 : vector<8x128xi32>
    %cst_40 = arith.constant 0.000000e+00 : f32
    %147 = vector.shape_cast %83 : vector<8x1xf32> to vector<8x1xf32>
    %148 = vector.broadcast %147 : vector<8x1xf32> to vector<8x128xf32>
    %149 = vector.broadcast %cst_40 : f32 to vector<8x128xf32>
    %150 = arith.select %146, %148, %149 : vector<8x128xi1>, vector<8x128xf32>
    %151 = arith.addf %144, %150 : vector<8x128xf32>
    %c2_i32 = arith.constant 2 : i32
    %152 = vector.broadcast %c2_i32 : i32 to vector<8x128xi32>
    %153 = arith.cmpi eq, %138, %152 : vector<8x128xi32>
    %cst_41 = arith.constant 0.000000e+00 : f32
    %154 = vector.shape_cast %96 : vector<8x1xf32> to vector<8x1xf32>
    %155 = vector.broadcast %154 : vector<8x1xf32> to vector<8x128xf32>
    %156 = vector.broadcast %cst_41 : f32 to vector<8x128xf32>
    %157 = arith.select %153, %155, %156 : vector<8x128xi1>, vector<8x128xf32>
    %158 = arith.addf %151, %157 : vector<8x128xf32>
    %c0_42 = arith.constant 0 : index
    %c0_43 = arith.constant 0 : index
    %159 = vector.load %arg5[%c0_42, %c0_43] : memref<8x128xf32, #tpu.memory_space<vmem>>, vector<8x128xf32>
    tpu.vector_store %arg5[%c0_42, %c0_43], %158 {strides = array<i32>} : memref<8x128xf32, #tpu.memory_space<vmem>>, vector<8x128xf32>,
    return
  }
}

</mosaic_0001>

<llo_original>
// kernel: transh_forward.1
$region0: #{transh_forward.1}
  #allocation0 [shape = 'u32[]', space=smem, size = 0x4, offset = 0x4, fixed_abs, tag = 'smem constant byte address 0x4 - core index']
  #allocation1 [shape = 'u32[144,128]{1,0:T(1,128)}', space=vmem, size = 0x12000, scoped, tag = 'internal scratch']
  %s0 = inlined_call_operand.vmem [shape: s32[8,3], index: 0, kind: input, shape index: {}]
  %s1 = inlined_call_operand.vmem [shape: s32[8,3], index: 1, kind: input, shape index: {}]
  %s2 = inlined_call_operand.vmem [shape: f32[50,32], index: 2, kind: input, shape index: {}]
  %s3 = inlined_call_operand.vmem [shape: f32[10,32], index: 3, kind: input, shape index: {}]
  %s4 = inlined_call_operand.vmem [shape: f32[10,32], index: 4, kind: input, shape index: {}]
  %s5 = inlined_call_operand.vmem [shape: f32[8,128], index: 5, kind: output, shape index: {}]
  %s6 = sld [smem:[#allocation0]]
  $region30: #{transh_forward.1} parent=0
    _
  %s8 = ssub.s32 1, %s6
  %s9 = scalar_select 0, %s8, %s6
  // Predicated region
  $region2: #{transh_forward.1} parent=0 // pred_check
    _
  $region3: #{transh_forward.1} parent=0 // pred_check_branch
    %11 = sbr.rel (0) target = $region5
  $region4: #{transh_forward.1} parent=0 // pred_region
    _
  $region5: #{transh_forward.1} parent=0 // pred_fallthru
    _
  // Predicated region
  $region6: #{transh_forward.1} parent=0 // pred_check
    _
  $region7: #{transh_forward.1} parent=0 // pred_check_branch
    %13 = sbr.rel (0) target = $region9
  $region8: #{transh_forward.1} parent=0 // pred_region
    _
  $region9: #{transh_forward.1} parent=0 // pred_fallthru
    _
  // Predicated region
  $region10: #{transh_forward.1} parent=0 // pred_check
    _
  $region11: #{transh_forward.1} parent=0 // pred_check_branch
    %15 = sbr.rel (0) target = $region13
  $region12: #{transh_forward.1} parent=0 // pred_region
    _
  $region13: #{transh_forward.1} parent=0 // pred_fallthru
    _
  // Predicated region
  $region14: #{transh_forward.1} parent=0 // pred_check
    _
  $region15: #{transh_forward.1} parent=0 // pred_check_branch
    %17 = sbr.rel (0) target = $region17
  $region16: #{transh_forward.1} parent=0 // pred_region
    _
  $region17: #{transh_forward.1} parent=0 // pred_fallthru
    _
  // Predicated region
  $region18: #{transh_forward.1} parent=0 // pred_check
    _
  $region19: #{transh_forward.1} parent=0 // pred_check_branch
    %19 = sbr.rel (0) target = $region21
  $region20: #{transh_forward.1} parent=0 // pred_region
    _
  $region21: #{transh_forward.1} parent=0 // pred_fallthru
    _
  %v20 = vld [vmem:[%s0] sm:$0xff]
  %v21 = vld [vmem:[%s1] sm:$0xff]
  %v22 = vld [vmem:[%s2] sm:$0xff]
  %v23 = vld [vmem:[%s2 + $0x8] sm:$0xff]
  %v24 = vld [vmem:[%s2 + $0x10] sm:$0xff]
  %v25 = vld [vmem:[%s2 + $0x18] sm:$0xff]
  %v26 = vld [vmem:[%s2 + $0x20] sm:$0xff]
  %v27 = vld [vmem:[%s2 + $0x28] sm:$0xff]
  %v28 = vld [vmem:[%s2 + $0x30] sm:$0x3]
  %v29 = vld [vmem:[%s3] sm:$0xff]
  %v30 = vld [vmem:[%s3 + $0x8] sm:$0x3]
  %v31 = vld [vmem:[%s4] sm:$0xff]
  %v32 = vld [vmem:[%s4 + $0x8] sm:$0x3]
  %v33 = vlaneseq
  %v34 = vshrl.u32 %v33, 7
  %v35 = vadd.s32 %v34, 8
  %v36 = vadd.s32 %v34, 16
  %v37 = vadd.s32 %v34, 24
  %v38 = vadd.s32 %v34, 32
  %v39 = vadd.s32 %v34, 40
  %v40 = vadd.s32 %v34, 48
  %v41 = vcombine.high %v20, %v20
  %v43 = vunpack.c.l.s4 1966171168
  %v44 = vunpack.c.0.s8 %v43
  %v45 = vlaneseq
  %v46 = vshrl.u32 %v45, 7
  %v47 = vsub.s32 %v44, %v46
  %v48 = vrot.slane %v20, %v47
  %v50 = vunpack.c.l.s4 1966171168
  %v51 = vunpack.c.0.s8 %v50
  %v52 = vlaneseq
  %v53 = vshrl.u32 %v52, 7
  %v54 = vsub.s32 %v51, %v53
  %v55 = vrot.slane %v41, %v54
  %v56 = vcombine.high %v48, %v48
  %v57 = vcombine.high %v55, %v55
  %v59 = vunpack.c.l.s4 1966171168
  %v60 = vunpack.c.0.s8 %v59
  %v61 = vlaneseq
  %v62 = vshrl.u32 %v61, 7
  %v63 = vsub.s32 %v60, %v62
  %v64 = vrot.slane %v48, %v63
  %v66 = vunpack.c.l.s4 1966171168
  %v67 = vunpack.c.0.s8 %v66
  %v68 = vlaneseq
  %v69 = vshrl.u32 %v68, 7
  %v70 = vsub.s32 %v67, %v69
  %v71 = vrot.slane %v55, %v70
  %v73 = vunpack.c.l.s4 1966171168
  %v74 = vunpack.c.0.s8 %v73
  %v75 = vlaneseq
  %v76 = vshrl.u32 %v75, 7
  %v77 = vsub.s32 %v74, %v76
  %v78 = vrot.slane %v56, %v77
  %v80 = vunpack.c.l.s4 1966171168
  %v81 = vunpack.c.0.s8 %v80
  %v82 = vlaneseq
  %v83 = vshrl.u32 %v82, 7
  %v84 = vsub.s32 %v81, %v83
  %v85 = vrot.slane %v57, %v84
  %v86 = vcombine.high %v64, %v64
  %v87 = vcombine.high %v71, %v71
  %v88 = vcombine.high %v78, %v78
  %v89 = vcombine.high %v85, %v85
  %v90 = vlaneseq
  %v91 = vshrl.u32 %v90, 7
  %v92 = vsub.s32 0, %v91
  %v93 = vrot.slane %v64, %v92
  %v94 = vlaneseq
  %v95 = vshrl.u32 %v94, 7
  %v96 = vsub.s32 0, %v95
  %v97 = vrot.slane %v78, %v96
  %v98 = vlaneseq
  %v99 = vshrl.u32 %v98, 7
  %v100 = vsub.s32 0, %v99
  %v101 = vrot.slane %v86, %v100
  %v102 = vlaneseq
  %v103 = vshrl.u32 %v102, 7
  %v104 = vsub.s32 0, %v103
  %v105 = vrot.slane %v88, %v104
  %v106 = vlaneseq
  %v107 = vshrl.u32 %v106, 7
  %v108 = vsub.s32 0, %v107
  %v109 = vrot.slane %v71, %v108
  %v110 = vlaneseq
  %v111 = vshrl.u32 %v110, 7
  %v112 = vsub.s32 0, %v111
  %v113 = vrot.slane %v85, %v112
  %v114 = vlaneseq
  %v115 = vshrl.u32 %v114, 7
  %v116 = vsub.s32 0, %v115
  %v117 = vrot.slane %v87, %v116
  %v118 = vlaneseq
  %v119 = vshrl.u32 %v118, 7
  %v120 = vsub.s32 0, %v119
  %v121 = vrot.slane %v89, %v120
  %122 = vset.pattern.permute.xlu0 0
  %123 = vperm.xlu0 %122, %v93
  %v124 = vpop.permute.xlu0 %123
  %125 = vset.pattern.permute.xlu0 0
  %126 = vperm.xlu0 %125, %v97
  %v127 = vpop.permute.xlu0 %126
  %128 = vset.pattern.permute.xlu0 0
  %129 = vperm.xlu0 %128, %v101
  %v130 = vpop.permute.xlu0 %129
  %131 = vset.pattern.permute.xlu0 0
  %132 = vperm.xlu0 %131, %v105
  %v133 = vpop.permute.xlu0 %132
  %134 = vset.pattern.permute.xlu0 0
  %135 = vperm.xlu0 %134, %v109
  %v136 = vpop.permute.xlu0 %135
  %137 = vset.pattern.permute.xlu0 0
  %138 = vperm.xlu0 %137, %v113
  %v139 = vpop.permute.xlu0 %138
  %140 = vset.pattern.permute.xlu0 0
  %141 = vperm.xlu0 %140, %v117
  %v142 = vpop.permute.xlu0 %141
  %143 = vset.pattern.permute.xlu0 0
  %144 = vperm.xlu0 %143, %v121
  %v145 = vpop.permute.xlu0 %144
  %vm146 = vcmp.eq.s32.totalorder %v34, %v124
  %vm147 = vcmp.eq.s32.totalorder %v35, %v124
  %vm148 = vcmp.eq.s32.totalorder %v36, %v124
  %vm149 = vcmp.eq.s32.totalorder %v37, %v124
  %vm150 = vcmp.eq.s32.totalorder %v38, %v124
  %vm151 = vcmp.eq.s32.totalorder %v39, %v124
  %vm152 = vcmp.eq.s32.totalorder %v40, %v124
  %vm153 = vcmp.eq.s32.totalorder %v34, %v127
  %vm154 = vcmp.eq.s32.totalorder %v35, %v127
  %vm155 = vcmp.eq.s32.totalorder %v36, %v127
  %vm156 = vcmp.eq.s32.totalorder %v37, %v127
  %vm157 = vcmp.eq.s32.totalorder %v38, %v127
  %vm158 = vcmp.eq.s32.totalorder %v39, %v127
  %vm159 = vcmp.eq.s32.totalorder %v40, %v127
  %vm160 = vcmp.eq.s32.totalorder %v34, %v130
  %vm161 = vcmp.eq.s32.totalorder %v35, %v130
  %vm162 = vcmp.eq.s32.totalorder %v36, %v130
  %vm163 = vcmp.eq.s32.totalorder %v37, %v130
  %vm164 = vcmp.eq.s32.totalorder %v38, %v130
  %vm165 = vcmp.eq.s32.totalorder %v39, %v130
  %vm166 = vcmp.eq.s32.totalorder %v40, %v130
  %vm167 = vcmp.eq.s32.totalorder %v34, %v133
  %vm168 = vcmp.eq.s32.totalorder %v35, %v133
  %vm169 = vcmp.eq.s32.totalorder %v36, %v133
  %vm170 = vcmp.eq.s32.totalorder %v37, %v133
  %vm171 = vcmp.eq.s32.totalorder %v38, %v133
  %vm172 = vcmp.eq.s32.totalorder %v39, %v133
  %vm173 = vcmp.eq.s32.totalorder %v40, %v133
  %vm174 = vcmp.eq.s32.totalorder %v34, %v136
  %vm175 = vcmp.eq.s32.totalorder %v35, %v136
  %vm176 = vcmp.eq.s32.totalorder %v36, %v136
  %vm177 = vcmp.eq.s32.totalorder %v37, %v136
  %vm178 = vcmp.eq.s32.totalorder %v38, %v136
  %vm179 = vcmp.eq.s32.totalorder %v39, %v136
  %vm180 = vcmp.eq.s32.totalorder %v40, %v136
  %vm181 = vcmp.eq.s32.totalorder %v34, %v139
  %vm182 = vcmp.eq.s32.totalorder %v35, %v139
  %vm183 = vcmp.eq.s32.totalorder %v36, %v139
  %vm184 = vcmp.eq.s32.totalorder %v37, %v139
  %vm185 = vcmp.eq.s32.totalorder %v38, %v139
  %vm186 = vcmp.eq.s32.totalorder %v39, %v139
  %vm187 = vcmp.eq.s32.totalorder %v40, %v139
  %vm188 = vcmp.eq.s32.totalorder %v34, %v142
  %vm189 = vcmp.eq.s32.totalorder %v35, %v142
  %vm190 = vcmp.eq.s32.totalorder %v36, %v142
  %vm191 = vcmp.eq.s32.totalorder %v37, %v142
  %vm192 = vcmp.eq.s32.totalorder %v38, %v142
  %vm193 = vcmp.eq.s32.totalorder %v39, %v142
  %vm194 = vcmp.eq.s32.totalorder %v40, %v142
  %vm195 = vcmp.eq.s32.totalorder %v34, %v145
  %vm196 = vcmp.eq.s32.totalorder %v35, %v145
  %vm197 = vcmp.eq.s32.totalorder %v36, %v145
  %vm198 = vcmp.eq.s32.totalorder %v37, %v145
  %vm199 = vcmp.eq.s32.totalorder %v38, %v145
  %vm200 = vcmp.eq.s32.totalorder %v39, %v145
  %vm201 = vcmp.eq.s32.totalorder %v40, %v145
  %v202 = vsel %vm146, %v22, 0.0
  %v203 = vsel %vm147, %v23, 0.0
  %v204 = vsel %vm148, %v24, 0.0
  %v205 = vsel %vm149, %v25, 0.0
  %v206 = vsel %vm150, %v26, 0.0
  %v207 = vsel %vm151, %v27, 0.0
  %v208 = vsel %vm152, %v28, 0.0
  %v209 = vsel %vm153, %v22, 0.0
  %v210 = vsel %vm154, %v23, 0.0
  %v211 = vsel %vm155, %v24, 0.0
  %v212 = vsel %vm156, %v25, 0.0
  %v213 = vsel %vm157, %v26, 0.0
  %v214 = vsel %vm158, %v27, 0.0
  %v215 = vsel %vm159, %v28, 0.0
  %v216 = vsel %vm160, %v22, 0.0
  %v217 = vsel %vm161, %v23, 0.0
  %v218 = vsel %vm162, %v24, 0.0
  %v219 = vsel %vm163, %v25, 0.0
  %v220 = vsel %vm164, %v26, 0.0
  %v221 = vsel %vm165, %v27, 0.0
  %v222 = vsel %vm166, %v28, 0.0
  %v223 = vsel %vm167, %v22, 0.0
  %v224 = vsel %vm168, %v23, 0.0
  %v225 = vsel %vm169, %v24, 0.0
  %v226 = vsel %vm170, %v25, 0.0
  %v227 = vsel %vm171, %v26, 0.0
  %v228 = vsel %vm172, %v27, 0.0
  %v229 = vsel %vm173, %v28, 0.0
  %v230 = vsel %vm174, %v22, 0.0
  %v231 = vsel %vm175, %v23, 0.0
  %v232 = vsel %vm176, %v24, 0.0
  %v233 = vsel %vm177, %v25, 0.0
  %v234 = vsel %vm178, %v26, 0.0
  %v235 = vsel %vm179, %v27, 0.0
  %v236 = vsel %vm180, %v28, 0.0
  %v237 = vsel %vm181, %v22, 0.0
  %v238 = vsel %vm182, %v23, 0.0
  %v239 = vsel %vm183, %v24, 0.0
  %v240 = vsel %vm184, %v25, 0.0
  %v241 = vsel %vm185, %v26, 0.0
  %v242 = vsel %vm186, %v27, 0.0
  %v243 = vsel %vm187, %v28, 0.0
  %v244 = vsel %vm188, %v22, 0.0
  %v245 = vsel %vm189, %v23, 0.0
  %v246 = vsel %vm190, %v24, 0.0
  %v247 = vsel %vm191, %v25, 0.0
  %v248 = vsel %vm192, %v26, 0.0
  %v249 = vsel %vm193, %v27, 0.0
  %v250 = vsel %vm194, %v28, 0.0
  %v251 = vsel %vm195, %v22, 0.0
  %v252 = vsel %vm196, %v23, 0.0
  %v253 = vsel %vm197, %v24, 0.0
  %v254 = vsel %vm198, %v25, 0.0
  %v255 = vsel %vm199, %v26, 0.0
  %v256 = vsel %vm200, %v27, 0.0
  %v257 = vsel %vm201, %v28, 0.0
  %vm258 = vcmask 261120
  %v259 = vsel %vm258, %v202, 0.0
  %v260 = vsel %vm258, %v203, 0.0
  %v261 = vadd.f32 %v259, %v260
  %v262 = vsel %vm258, %v204, 0.0
  %v263 = vadd.f32 %v261, %v262
  %v264 = vsel %vm258, %v205, 0.0
  %v265 = vadd.f32 %v263, %v264
  %v266 = vsel %vm258, %v206, 0.0
  %v267 = vadd.f32 %v265, %v266
  %v268 = vsel %vm258, %v207, 0.0
  %v269 = vadd.f32 %v267, %v268
  %vm270 = vcmask 254976
  %v271 = vsel %vm270, %v208, 0.0
  %v272 = vadd.f32 %v269, %v271
  %v273 = vrot.slane %v272, 4
  %v274 = vadd.f32 %v272, %v273
  %v275 = vrot.slane %v274, 2
  %v276 = vadd.f32 %v274, %v275
  %v277 = vrot.slane %v276, 1
  %v278 = vadd.f32 %v276, %v277
  %v279 = vsel %vm258, %v209, 0.0
  %v280 = vsel %vm258, %v210, 0.0
  %v281 = vadd.f32 %v279, %v280
  %v282 = vsel %vm258, %v211, 0.0
  %v283 = vadd.f32 %v281, %v282
  %v284 = vsel %vm258, %v212, 0.0
  %v285 = vadd.f32 %v283, %v284
  %v286 = vsel %vm258, %v213, 0.0
  %v287 = vadd.f32 %v285, %v286
  %v288 = vsel %vm258, %v214, 0.0
  %v289 = vadd.f32 %v287, %v288
  %v290 = vsel %vm270, %v215, 0.0
  %v291 = vadd.f32 %v289, %v290
  %v292 = vrot.slane %v291, 4
  %v293 = vadd.f32 %v291, %v292
  %v294 = vrot.slane %v293, 2
  %v295 = vadd.f32 %v293, %v294
  %v296 = vrot.slane %v295, 1
  %v297 = vadd.f32 %v295, %v296
  %v298 = vsel %vm258, %v216, 0.0
  %v299 = vsel %vm258, %v217, 0.0
  %v300 = vadd.f32 %v298, %v299
  %v301 = vsel %vm258, %v218, 0.0
  %v302 = vadd.f32 %v300, %v301
  %v303 = vsel %vm258, %v219, 0.0
  %v304 = vadd.f32 %v302, %v303
  %v305 = vsel %vm258, %v220, 0.0
  %v306 = vadd.f32 %v304, %v305
  %v307 = vsel %vm258, %v221, 0.0
  %v308 = vadd.f32 %v306, %v307
  %v309 = vsel %vm270, %v222, 0.0
  %v310 = vadd.f32 %v308, %v309
  %v311 = vrot.slane %v310, 4
  %v312 = vadd.f32 %v310, %v311
  %v313 = vrot.slane %v312, 2
  %v314 = vadd.f32 %v312, %v313
  %v315 = vrot.slane %v314, 1
  %v316 = vadd.f32 %v314, %v315
  %v317 = vsel %vm258, %v223, 0.0
  %v318 = vsel %vm258, %v224, 0.0
  %v319 = vadd.f32 %v317, %v318
  %v320 = vsel %vm258, %v225, 0.0
  %v321 = vadd.f32 %v319, %v320
  %v322 = vsel %vm258, %v226, 0.0
  %v323 = vadd.f32 %v321, %v322
  %v324 = vsel %vm258, %v227, 0.0
  %v325 = vadd.f32 %v323, %v324
  %v326 = vsel %vm258, %v228, 0.0
  %v327 = vadd.f32 %v325, %v326
  %v328 = vsel %vm270, %v229, 0.0
  %v329 = vadd.f32 %v327, %v328
  %v330 = vrot.slane %v329, 4
  %v331 = vadd.f32 %v329, %v330
  %v332 = vrot.slane %v331, 2
  %v333 = vadd.f32 %v331, %v332
  %v334 = vrot.slane %v333, 1
  %v335 = vadd.f32 %v333, %v334
  %v336 = vsel %vm258, %v230, 0.0
  %v337 = vsel %vm258, %v231, 0.0
  %v338 = vadd.f32 %v336, %v337
  %v339 = vsel %vm258, %v232, 0.0
  %v340 = vadd.f32 %v338, %v339
  %v341 = vsel %vm258, %v233, 0.0
  %v342 = vadd.f32 %v340, %v341
  %v343 = vsel %vm258, %v234, 0.0
  %v344 = vadd.f32 %v342, %v343
  %v345 = vsel %vm258, %v235, 0.0
  %v346 = vadd.f32 %v344, %v345
  %v347 = vsel %vm270, %v236, 0.0
  %v348 = vadd.f32 %v346, %v347
  %v349 = vrot.slane %v348, 4
  %v350 = vadd.f32 %v348, %v349
  %v351 = vrot.slane %v350, 2
  %v352 = vadd.f32 %v350, %v351
  %v353 = vrot.slane %v352, 1
  %v354 = vadd.f32 %v352, %v353
  %v355 = vsel %vm258, %v237, 0.0
  %v356 = vsel %vm258, %v238, 0.0
  %v357 = vadd.f32 %v355, %v356
  %v358 = vsel %vm258, %v239, 0.0
  %v359 = vadd.f32 %v357, %v358
  %v360 = vsel %vm258, %v240, 0.0
  %v361 = vadd.f32 %v359, %v360
  %v362 = vsel %vm258, %v241, 0.0
  %v363 = vadd.f32 %v361, %v362
  %v364 = vsel %vm258, %v242, 0.0
  %v365 = vadd.f32 %v363, %v364
  %v366 = vsel %vm270, %v243, 0.0
  %v367 = vadd.f32 %v365, %v366
  %v368 = vrot.slane %v367, 4
  %v369 = vadd.f32 %v367, %v368
  %v370 = vrot.slane %v369, 2
  %v371 = vadd.f32 %v369, %v370
  %v372 = vrot.slane %v371, 1
  %v373 = vadd.f32 %v371, %v372
  %v374 = vsel %vm258, %v244, 0.0
  %v375 = vsel %vm258, %v245, 0.0
  %v376 = vadd.f32 %v374, %v375
  %v377 = vsel %vm258, %v246, 0.0
  %v378 = vadd.f32 %v376, %v377
  %v379 = vsel %vm258, %v247, 0.0
  %v380 = vadd.f32 %v378, %v379
  %v381 = vsel %vm258, %v248, 0.0
  %v382 = vadd.f32 %v380, %v381
  %v383 = vsel %vm258, %v249, 0.0
  %v384 = vadd.f32 %v382, %v383
  %v385 = vsel %vm270, %v250, 0.0
  %v386 = vadd.f32 %v384, %v385
  %v387 = vrot.slane %v386, 4
  %v388 = vadd.f32 %v386, %v387
  %v389 = vrot.slane %v388, 2
  %v390 = vadd.f32 %v388, %v389
  %v391 = vrot.slane %v390, 1
  %v392 = vadd.f32 %v390, %v391
  %v393 = vsel %vm258, %v251, 0.0
  %v394 = vsel %vm258, %v252, 0.0
  %v395 = vadd.f32 %v393, %v394
  %v396 = vsel %vm258, %v253, 0.0
  %v397 = vadd.f32 %v395, %v396
  %v398 = vsel %vm258, %v254, 0.0
  %v399 = vadd.f32 %v397, %v398
  %v400 = vsel %vm258, %v255, 0.0
  %v401 = vadd.f32 %v399, %v400
  %v402 = vsel %vm258, %v256, 0.0
  %v403 = vadd.f32 %v401, %v402
  %v404 = vsel %vm270, %v257, 0.0
  %v405 = vadd.f32 %v403, %v404
  %v406 = vrot.slane %v405, 4
  %v407 = vadd.f32 %v405, %v406
  %v408 = vrot.slane %v407, 2
  %v409 = vadd.f32 %v407, %v408
  %v410 = vrot.slane %v409, 1
  %v411 = vadd.f32 %v409, %v410
  %412 = vset.pattern.permute.xlu0 2
  %413 = vperm.xlu0 %412, %v93
  %v414 = vpop.permute.xlu0 %413
  %415 = vset.pattern.permute.xlu0 2
  %416 = vperm.xlu0 %415, %v97
  %v417 = vpop.permute.xlu0 %416
  %418 = vset.pattern.permute.xlu0 2
  %419 = vperm.xlu0 %418, %v101
  %v420 = vpop.permute.xlu0 %419
  %421 = vset.pattern.permute.xlu0 2
  %422 = vperm.xlu0 %421, %v105
  %v423 = vpop.permute.xlu0 %422
  %424 = vset.pattern.permute.xlu0 2
  %425 = vperm.xlu0 %424, %v109
  %v426 = vpop.permute.xlu0 %425
  %427 = vset.pattern.permute.xlu0 2
  %428 = vperm.xlu0 %427, %v113
  %v429 = vpop.permute.xlu0 %428
  %430 = vset.pattern.permute.xlu0 2
  %431 = vperm.xlu0 %430, %v117
  %v432 = vpop.permute.xlu0 %431
  %433 = vset.pattern.permute.xlu0 2
  %434 = vperm.xlu0 %433, %v121
  %v435 = vpop.permute.xlu0 %434
  %vm436 = vcmp.eq.s32.totalorder %v34, %v414
  %vm437 = vcmp.eq.s32.totalorder %v35, %v414
  %vm438 = vcmp.eq.s32.totalorder %v36, %v414
  %vm439 = vcmp.eq.s32.totalorder %v37, %v414
  %vm440 = vcmp.eq.s32.totalorder %v38, %v414
  %vm441 = vcmp.eq.s32.totalorder %v39, %v414
  %vm442 = vcmp.eq.s32.totalorder %v40, %v414
  %vm443 = vcmp.eq.s32.totalorder %v34, %v417
  %vm444 = vcmp.eq.s32.totalorder %v35, %v417
  %vm445 = vcmp.eq.s32.totalorder %v36, %v417
  %vm446 = vcmp.eq.s32.totalorder %v37, %v417
  %vm447 = vcmp.eq.s32.totalorder %v38, %v417
  %vm448 = vcmp.eq.s32.totalorder %v39, %v417
  %vm449 = vcmp.eq.s32.totalorder %v40, %v417
  %vm450 = vcmp.eq.s32.totalorder %v34, %v420
  %vm451 = vcmp.eq.s32.totalorder %v35, %v420
  %vm452 = vcmp.eq.s32.totalorder %v36, %v420
  %vm453 = vcmp.eq.s32.totalorder %v37, %v420
  %vm454 = vcmp.eq.s32.totalorder %v38, %v420
  %vm455 = vcmp.eq.s32.totalorder %v39, %v420
  %vm456 = vcmp.eq.s32.totalorder %v40, %v420
  %vm457 = vcmp.eq.s32.totalorder %v34, %v423
  %vm458 = vcmp.eq.s32.totalorder %v35, %v423
  %vm459 = vcmp.eq.s32.totalorder %v36, %v423
  %vm460 = vcmp.eq.s32.totalorder %v37, %v423
  %vm461 = vcmp.eq.s32.totalorder %v38, %v423
  %vm462 = vcmp.eq.s32.totalorder %v39, %v423
  %vm463 = vcmp.eq.s32.totalorder %v40, %v423
  %vm464 = vcmp.eq.s32.totalorder %v34, %v426
  %vm465 = vcmp.eq.s32.totalorder %v35, %v426
  %vm466 = vcmp.eq.s32.totalorder %v36, %v426
  %vm467 = vcmp.eq.s32.totalorder %v37, %v426
  %vm468 = vcmp.eq.s32.totalorder %v38, %v426
  %vm469 = vcmp.eq.s32.totalorder %v39, %v426
  %vm470 = vcmp.eq.s32.totalorder %v40, %v426
  %vm471 = vcmp.eq.s32.totalorder %v34, %v429
  %vm472 = vcmp.eq.s32.totalorder %v35, %v429
  %vm473 = vcmp.eq.s32.totalorder %v36, %v429
  %vm474 = vcmp.eq.s32.totalorder %v37, %v429
  %vm475 = vcmp.eq.s32.totalorder %v38, %v429
  %vm476 = vcmp.eq.s32.totalorder %v39, %v429
  %vm477 = vcmp.eq.s32.totalorder %v40, %v429
  %vm478 = vcmp.eq.s32.totalorder %v34, %v432
  %vm479 = vcmp.eq.s32.totalorder %v35, %v432
  %vm480 = vcmp.eq.s32.totalorder %v36, %v432
  %vm481 = vcmp.eq.s32.totalorder %v37, %v432
  %vm482 = vcmp.eq.s32.totalorder %v38, %v432
  %vm483 = vcmp.eq.s32.totalorder %v39, %v432
  %vm484 = vcmp.eq.s32.totalorder %v40, %v432
  %vm485 = vcmp.eq.s32.totalorder %v34, %v435
  %vm486 = vcmp.eq.s32.totalorder %v35, %v435
  %vm487 = vcmp.eq.s32.totalorder %v36, %v435
  %vm488 = vcmp.eq.s32.totalorder %v37, %v435
  %vm489 = vcmp.eq.s32.totalorder %v38, %v435
  %vm490 = vcmp.eq.s32.totalorder %v39, %v435
  %vm491 = vcmp.eq.s32.totalorder %v40, %v435
  %v492 = vsel %vm436, %v22, 0.0
  %v493 = vsel %vm437, %v23, 0.0
  %v494 = vsel %vm438, %v24, 0.0
  %v495 = vsel %vm439, %v25, 0.0
  %v496 = vsel %vm440, %v26, 0.0
  %v497 = vsel %vm441, %v27, 0.0
  %v498 = vsel %vm442, %v28, 0.0
  %v499 = vsel %vm443, %v22, 0.0
  %v500 = vsel %vm444, %v23, 0.0
  %v501 = vsel %vm445, %v24, 0.0
  %v502 = vsel %vm446, %v25, 0.0
  %v503 = vsel %vm447, %v26, 0.0
  %v504 = vsel %vm448, %v27, 0.0
  %v505 = vsel %vm449, %v28, 0.0
  %v506 = vsel %vm450, %v22, 0.0
  %v507 = vsel %vm451, %v23, 0.0
  %v508 = vsel %vm452, %v24, 0.0
  %v509 = vsel %vm453, %v25, 0.0
  %v510 = vsel %vm454, %v26, 0.0
  %v511 = vsel %vm455, %v27, 0.0
  %v512 = vsel %vm456, %v28, 0.0
  %v513 = vsel %vm457, %v22, 0.0
  %v514 = vsel %vm458, %v23, 0.0
  %v515 = vsel %vm459, %v24, 0.0
  %v516 = vsel %vm460, %v25, 0.0
  %v517 = vsel %vm461, %v26, 0.0
  %v518 = vsel %vm462, %v27, 0.0
  %v519 = vsel %vm463, %v28, 0.0
  %v520 = vsel %vm464, %v22, 0.0
  %v521 = vsel %vm465, %v23, 0.0
  %v522 = vsel %vm466, %v24, 0.0
  %v523 = vsel %vm467, %v25, 0.0
  %v524 = vsel %vm468, %v26, 0.0
  %v525 = vsel %vm469, %v27, 0.0
  %v526 = vsel %vm470, %v28, 0.0
  %v527 = vsel %vm471, %v22, 0.0
  %v528 = vsel %vm472, %v23, 0.0
  %v529 = vsel %vm473, %v24, 0.0
  %v530 = vsel %vm474, %v25, 0.0
  %v531 = vsel %vm475, %v26, 0.0
  %v532 = vsel %vm476, %v27, 0.0
  %v533 = vsel %vm477, %v28, 0.0
  %v534 = vsel %vm478, %v22, 0.0
  %v535 = vsel %vm479, %v23, 0.0
  %v536 = vsel %vm480, %v24, 0.0
  %v537 = vsel %vm481, %v25, 0.0
  %v538 = vsel %vm482, %v26, 0.0
  %v539 = vsel %vm483, %v27, 0.0
  %v540 = vsel %vm484, %v28, 0.0
  %v541 = vsel %vm485, %v22, 0.0
  %v542 = vsel %vm486, %v23, 0.0
  %v543 = vsel %vm487, %v24, 0.0
  %v544 = vsel %vm488, %v25, 0.0
  %v545 = vsel %vm489, %v26, 0.0
  %v546 = vsel %vm490, %v27, 0.0
  %v547 = vsel %vm491, %v28, 0.0
  %v548 = vsel %vm258, %v492, 0.0
  %v549 = vsel %vm258, %v493, 0.0
  %v550 = vadd.f32 %v548, %v549
  %v551 = vsel %vm258, %v494, 0.0
  %v552 = vadd.f32 %v550, %v551
  %v553 = vsel %vm258, %v495, 0.0
  %v554 = vadd.f32 %v552, %v553
  %v555 = vsel %vm258, %v496, 0.0
  %v556 = vadd.f32 %v554, %v555
  %v557 = vsel %vm258, %v497, 0.0
  %v558 = vadd.f32 %v556, %v557
  %v559 = vsel %vm270, %v498, 0.0
  %v560 = vadd.f32 %v558, %v559
  %v561 = vrot.slane %v560, 4
  %v562 = vadd.f32 %v560, %v561
  %v563 = vrot.slane %v562, 2
  %v564 = vadd.f32 %v562, %v563
  %v565 = vrot.slane %v564, 1
  %v566 = vadd.f32 %v564, %v565
  %v567 = vsel %vm258, %v499, 0.0
  %v568 = vsel %vm258, %v500, 0.0
  %v569 = vadd.f32 %v567, %v568
  %v570 = vsel %vm258, %v501, 0.0
  %v571 = vadd.f32 %v569, %v570
  %v572 = vsel %vm258, %v502, 0.0
  %v573 = vadd.f32 %v571, %v572
  %v574 = vsel %vm258, %v503, 0.0
  %v575 = vadd.f32 %v573, %v574
  %v576 = vsel %vm258, %v504, 0.0
  %v577 = vadd.f32 %v575, %v576
  %v578 = vsel %vm270, %v505, 0.0
  %v579 = vadd.f32 %v577, %v578
  %v580 = vrot.slane %v579, 4
  %v581 = vadd.f32 %v579, %v580
  %v582 = vrot.slane %v581, 2
  %v583 = vadd.f32 %v581, %v582
  %v584 = vrot.slane %v583, 1
  %v585 = vadd.f32 %v583, %v584
  %v586 = vsel %vm258, %v506, 0.0
  %v587 = vsel %vm258, %v507, 0.0
  %v588 = vadd.f32 %v586, %v587
  %v589 = vsel %vm258, %v508, 0.0
  %v590 = vadd.f32 %v588, %v589
  %v591 = vsel %vm258, %v509, 0.0
  %v592 = vadd.f32 %v590, %v591
  %v593 = vsel %vm258, %v510, 0.0
  %v594 = vadd.f32 %v592, %v593
  %v595 = vsel %vm258, %v511, 0.0
  %v596 = vadd.f32 %v594, %v595
  %v597 = vsel %vm270, %v512, 0.0
  %v598 = vadd.f32 %v596, %v597
  %v599 = vrot.slane %v598, 4
  %v600 = vadd.f32 %v598, %v599
  %v601 = vrot.slane %v600, 2
  %v602 = vadd.f32 %v600, %v601
  %v603 = vrot.slane %v602, 1
  %v604 = vadd.f32 %v602, %v603
  %v605 = vsel %vm258, %v513, 0.0
  %v606 = vsel %vm258, %v514, 0.0
  %v607 = vadd.f32 %v605, %v606
  %v608 = vsel %vm258, %v515, 0.0
  %v609 = vadd.f32 %v607, %v608
  %v610 = vsel %vm258, %v516, 0.0
  %v611 = vadd.f32 %v609, %v610
  %v612 = vsel %vm258, %v517, 0.0
  %v613 = vadd.f32 %v611, %v612
  %v614 = vsel %vm258, %v518, 0.0
  %v615 = vadd.f32 %v613, %v614
  %v616 = vsel %vm270, %v519, 0.0
  %v617 = vadd.f32 %v615, %v616
  %v618 = vrot.slane %v617, 4
  %v619 = vadd.f32 %v617, %v618
  %v620 = vrot.slane %v619, 2
  %v621 = vadd.f32 %v619, %v620
  %v622 = vrot.slane %v621, 1
  %v623 = vadd.f32 %v621, %v622
  %v624 = vsel %vm258, %v520, 0.0
  %v625 = vsel %vm258, %v521, 0.0
  %v626 = vadd.f32 %v624, %v625
  %v627 = vsel %vm258, %v522, 0.0
  %v628 = vadd.f32 %v626, %v627
  %v629 = vsel %vm258, %v523, 0.0
  %v630 = vadd.f32 %v628, %v629
  %v631 = vsel %vm258, %v524, 0.0
  %v632 = vadd.f32 %v630, %v631
  %v633 = vsel %vm258, %v525, 0.0
  %v634 = vadd.f32 %v632, %v633
  %v635 = vsel %vm270, %v526, 0.0
  %v636 = vadd.f32 %v634, %v635
  %v637 = vrot.slane %v636, 4
  %v638 = vadd.f32 %v636, %v637
  %v639 = vrot.slane %v638, 2
  %v640 = vadd.f32 %v638, %v639
  %v641 = vrot.slane %v640, 1
  %v642 = vadd.f32 %v640, %v641
  %v643 = vsel %vm258, %v527, 0.0
  %v644 = vsel %vm258, %v528, 0.0
  %v645 = vadd.f32 %v643, %v644
  %v646 = vsel %vm258, %v529, 0.0
  %v647 = vadd.f32 %v645, %v646
  %v648 = vsel %vm258, %v530, 0.0
  %v649 = vadd.f32 %v647, %v648
  %v650 = vsel %vm258, %v531, 0.0
  %v651 = vadd.f32 %v649, %v650
  %v652 = vsel %vm258, %v532, 0.0
  %v653 = vadd.f32 %v651, %v652
  %v654 = vsel %vm270, %v533, 0.0
  %v655 = vadd.f32 %v653, %v654
  %v656 = vrot.slane %v655, 4
  %v657 = vadd.f32 %v655, %v656
  %v658 = vrot.slane %v657, 2
  %v659 = vadd.f32 %v657, %v658
  %v660 = vrot.slane %v659, 1
  %v661 = vadd.f32 %v659, %v660
  %v662 = vsel %vm258, %v534, 0.0
  %v663 = vsel %vm258, %v535, 0.0
  %v664 = vadd.f32 %v662, %v663
  %v665 = vsel %vm258, %v536, 0.0
  %v666 = vadd.f32 %v664, %v665
  %v667 = vsel %vm258, %v537, 0.0
  %v668 = vadd.f32 %v666, %v667
  %v669 = vsel %vm258, %v538, 0.0
  %v670 = vadd.f32 %v668, %v669
  %v671 = vsel %vm258, %v539, 0.0
  %v672 = vadd.f32 %v670, %v671
  %v673 = vsel %vm270, %v540, 0.0
  %v674 = vadd.f32 %v672, %v673
  %v675 = vrot.slane %v674, 4
  %v676 = vadd.f32 %v674, %v675
  %v677 = vrot.slane %v676, 2
  %v678 = vadd.f32 %v676, %v677
  %v679 = vrot.slane %v678, 1
  %v680 = vadd.f32 %v678, %v679
  %v681 = vsel %vm258, %v541, 0.0
  %v682 = vsel %vm258, %v542, 0.0
  %v683 = vadd.f32 %v681, %v682
  %v684 = vsel %vm258, %v543, 0.0
  %v685 = vadd.f32 %v683, %v684
  %v686 = vsel %vm258, %v544, 0.0
  %v687 = vadd.f32 %v685, %v686
  %v688 = vsel %vm258, %v545, 0.0
  %v689 = vadd.f32 %v687, %v688
  %v690 = vsel %vm258, %v546, 0.0
  %v691 = vadd.f32 %v689, %v690
  %v692 = vsel %vm270, %v547, 0.0
  %v693 = vadd.f32 %v691, %v692
  %v694 = vrot.slane %v693, 4
  %v695 = vadd.f32 %v693, %v694
  %v696 = vrot.slane %v695, 2
  %v697 = vadd.f32 %v695, %v696
  %v698 = vrot.slane %v697, 1
  %v699 = vadd.f32 %v697, %v698
  %v700 = vcombine.high %v21, %v21
  %v702 = vunpack.c.l.s4 1966171168
  %v703 = vunpack.c.0.s8 %v702
  %v704 = vlaneseq
  %v705 = vshrl.u32 %v704, 7
  %v706 = vsub.s32 %v703, %v705
  %v707 = vrot.slane %v21, %v706
  %v709 = vunpack.c.l.s4 1966171168
  %v710 = vunpack.c.0.s8 %v709
  %v711 = vlaneseq
  %v712 = vshrl.u32 %v711, 7
  %v713 = vsub.s32 %v710, %v712
  %v714 = vrot.slane %v700, %v713
  %v715 = vcombine.high %v707, %v707
  %v716 = vcombine.high %v714, %v714
  %v718 = vunpack.c.l.s4 1966171168
  %v719 = vunpack.c.0.s8 %v718
  %v720 = vlaneseq
  %v721 = vshrl.u32 %v720, 7
  %v722 = vsub.s32 %v719, %v721
  %v723 = vrot.slane %v707, %v722
  %v725 = vunpack.c.l.s4 1966171168
  %v726 = vunpack.c.0.s8 %v725
  %v727 = vlaneseq
  %v728 = vshrl.u32 %v727, 7
  %v729 = vsub.s32 %v726, %v728
  %v730 = vrot.slane %v714, %v729
  %v732 = vunpack.c.l.s4 1966171168
  %v733 = vunpack.c.0.s8 %v732
  %v734 = vlaneseq
  %v735 = vshrl.u32 %v734, 7
  %v736 = vsub.s32 %v733, %v735
  %v737 = vrot.slane %v715, %v736
  %v739 = vunpack.c.l.s4 1966171168
  %v740 = vunpack.c.0.s8 %v739
  %v741 = vlaneseq
  %v742 = vshrl.u32 %v741, 7
  %v743 = vsub.s32 %v740, %v742
  %v744 = vrot.slane %v716, %v743
  %v745 = vcombine.high %v723, %v723
  %v746 = vcombine.high %v730, %v730
  %v747 = vcombine.high %v737, %v737
  %v748 = vcombine.high %v744, %v744
  %v749 = vlaneseq
  %v750 = vshrl.u32 %v749, 7
  %v751 = vsub.s32 0, %v750
  %v752 = vrot.slane %v723, %v751
  %v753 = vlaneseq
  %v754 = vshrl.u32 %v753, 7
  %v755 = vsub.s32 0, %v754
  %v756 = vrot.slane %v737, %v755
  %v757 = vlaneseq
  %v758 = vshrl.u32 %v757, 7
  %v759 = vsub.s32 0, %v758
  %v760 = vrot.slane %v745, %v759
  %v761 = vlaneseq
  %v762 = vshrl.u32 %v761, 7
  %v763 = vsub.s32 0, %v762
  %v764 = vrot.slane %v747, %v763
  %v765 = vlaneseq
  %v766 = vshrl.u32 %v765, 7
  %v767 = vsub.s32 0, %v766
  %v768 = vrot.slane %v730, %v767
  %v769 = vlaneseq
  %v770 = vshrl.u32 %v769, 7
  %v771 = vsub.s32 0, %v770
  %v772 = vrot.slane %v744, %v771
  %v773 = vlaneseq
  %v774 = vshrl.u32 %v773, 7
  %v775 = vsub.s32 0, %v774
  %v776 = vrot.slane %v746, %v775
  %v777 = vlaneseq
  %v778 = vshrl.u32 %v777, 7
  %v779 = vsub.s32 0, %v778
  %v780 = vrot.slane %v748, %v779
  %781 = vset.pattern.permute.xlu0 0
  %782 = vperm.xlu0 %781, %v752
  %v783 = vpop.permute.xlu0 %782
  %784 = vset.pattern.permute.xlu0 0
  %785 = vperm.xlu0 %784, %v756
  %v786 = vpop.permute.xlu0 %785
  %787 = vset.pattern.permute.xlu0 0
  %788 = vperm.xlu0 %787, %v760
  %v789 = vpop.permute.xlu0 %788
  %790 = vset.pattern.permute.xlu0 0
  %791 = vperm.xlu0 %790, %v764
  %v792 = vpop.permute.xlu0 %791
  %793 = vset.pattern.permute.xlu0 0
  %794 = vperm.xlu0 %793, %v768
  %v795 = vpop.permute.xlu0 %794
  %796 = vset.pattern.permute.xlu0 0
  %797 = vperm.xlu0 %796, %v772
  %v798 = vpop.permute.xlu0 %797
  %799 = vset.pattern.permute.xlu0 0
  %800 = vperm.xlu0 %799, %v776
  %v801 = vpop.permute.xlu0 %800
  %802 = vset.pattern.permute.xlu0 0
  %803 = vperm.xlu0 %802, %v780
  %v804 = vpop.permute.xlu0 %803
  %vm805 = vcmp.eq.s32.totalorder %v34, %v783
  %vm806 = vcmp.eq.s32.totalorder %v35, %v783
  %vm807 = vcmp.eq.s32.totalorder %v36, %v783
  %vm808 = vcmp.eq.s32.totalorder %v37, %v783
  %vm809 = vcmp.eq.s32.totalorder %v38, %v783
  %vm810 = vcmp.eq.s32.totalorder %v39, %v783
  %vm811 = vcmp.eq.s32.totalorder %v40, %v783
  %vm812 = vcmp.eq.s32.totalorder %v34, %v786
  %vm813 = vcmp.eq.s32.totalorder %v35, %v786
  %vm814 = vcmp.eq.s32.totalorder %v36, %v786
  %vm815 = vcmp.eq.s32.totalorder %v37, %v786
  %vm816 = vcmp.eq.s32.totalorder %v38, %v786
  %vm817 = vcmp.eq.s32.totalorder %v39, %v786
  %vm818 = vcmp.eq.s32.totalorder %v40, %v786
  %vm819 = vcmp.eq.s32.totalorder %v34, %v789
  %vm820 = vcmp.eq.s32.totalorder %v35, %v789
  %vm821 = vcmp.eq.s32.totalorder %v36, %v789
  %vm822 = vcmp.eq.s32.totalorder %v37, %v789
  %vm823 = vcmp.eq.s32.totalorder %v38, %v789
  %vm824 = vcmp.eq.s32.totalorder %v39, %v789
  %vm825 = vcmp.eq.s32.totalorder %v40, %v789
  %vm826 = vcmp.eq.s32.totalorder %v34, %v792
  %vm827 = vcmp.eq.s32.totalorder %v35, %v792
  %vm828 = vcmp.eq.s32.totalorder %v36, %v792
  %vm829 = vcmp.eq.s32.totalorder %v37, %v792
  %vm830 = vcmp.eq.s32.totalorder %v38, %v792
  %vm831 = vcmp.eq.s32.totalorder %v39, %v792
  %vm832 = vcmp.eq.s32.totalorder %v40, %v792
  %vm833 = vcmp.eq.s32.totalorder %v34, %v795
  %vm834 = vcmp.eq.s32.totalorder %v35, %v795
  %vm835 = vcmp.eq.s32.totalorder %v36, %v795
  %vm836 = vcmp.eq.s32.totalorder %v37, %v795
  %vm837 = vcmp.eq.s32.totalorder %v38, %v795
  %vm838 = vcmp.eq.s32.totalorder %v39, %v795
  %vm839 = vcmp.eq.s32.totalorder %v40, %v795
  %vm840 = vcmp.eq.s32.totalorder %v34, %v798
  %vm841 = vcmp.eq.s32.totalorder %v35, %v798
  %vm842 = vcmp.eq.s32.totalorder %v36, %v798
  %vm843 = vcmp.eq.s32.totalorder %v37, %v798
  %vm844 = vcmp.eq.s32.totalorder %v38, %v798
  %vm845 = vcmp.eq.s32.totalorder %v39, %v798
  %vm846 = vcmp.eq.s32.totalorder %v40, %v798
  %vm847 = vcmp.eq.s32.totalorder %v34, %v801
  %vm848 = vcmp.eq.s32.totalorder %v35, %v801
  %vm849 = vcmp.eq.s32.totalorder %v36, %v801
  %vm850 = vcmp.eq.s32.totalorder %v37, %v801
  %vm851 = vcmp.eq.s32.totalorder %v38, %v801
  %vm852 = vcmp.eq.s32.totalorder %v39, %v801
  %vm853 = vcmp.eq.s32.totalorder %v40, %v801
  %vm854 = vcmp.eq.s32.totalorder %v34, %v804
  %vm855 = vcmp.eq.s32.totalorder %v35, %v804
  %vm856 = vcmp.eq.s32.totalorder %v36, %v804
  %vm857 = vcmp.eq.s32.totalorder %v37, %v804
  %vm858 = vcmp.eq.s32.totalorder %v38, %v804
  %vm859 = vcmp.eq.s32.totalorder %v39, %v804
  %vm860 = vcmp.eq.s32.totalorder %v40, %v804
  %v861 = vsel %vm805, %v22, 0.0
  %v862 = vsel %vm806, %v23, 0.0
  %v863 = vsel %vm807, %v24, 0.0
  %v864 = vsel %vm808, %v25, 0.0
  %v865 = vsel %vm809, %v26, 0.0
  %v866 = vsel %vm810, %v27, 0.0
  %v867 = vsel %vm811, %v28, 0.0
  %v868 = vsel %vm812, %v22, 0.0
  %v869 = vsel %vm813, %v23, 0.0
  %v870 = vsel %vm814, %v24, 0.0
  %v871 = vsel %vm815, %v25, 0.0
  %v872 = vsel %vm816, %v26, 0.0
  %v873 = vsel %vm817, %v27, 0.0
  %v874 = vsel %vm818, %v28, 0.0
  %v875 = vsel %vm819, %v22, 0.0
  %v876 = vsel %vm820, %v23, 0.0
  %v877 = vsel %vm821, %v24, 0.0
  %v878 = vsel %vm822, %v25, 0.0
  %v879 = vsel %vm823, %v26, 0.0
  %v880 = vsel %vm824, %v27, 0.0
  %v881 = vsel %vm825, %v28, 0.0
  %v882 = vsel %vm826, %v22, 0.0
  %v883 = vsel %vm827, %v23, 0.0
  %v884 = vsel %vm828, %v24, 0.0
  %v885 = vsel %vm829, %v25, 0.0
  %v886 = vsel %vm830, %v26, 0.0
  %v887 = vsel %vm831, %v27, 0.0
  %v888 = vsel %vm832, %v28, 0.0
  %v889 = vsel %vm833, %v22, 0.0
  %v890 = vsel %vm834, %v23, 0.0
  %v891 = vsel %vm835, %v24, 0.0
  %v892 = vsel %vm836, %v25, 0.0
  %v893 = vsel %vm837, %v26, 0.0
  %v894 = vsel %vm838, %v27, 0.0
  %v895 = vsel %vm839, %v28, 0.0
  %v896 = vsel %vm840, %v22, 0.0
  %v897 = vsel %vm841, %v23, 0.0
  %v898 = vsel %vm842, %v24, 0.0
  %v899 = vsel %vm843, %v25, 0.0
  %v900 = vsel %vm844, %v26, 0.0
  %v901 = vsel %vm845, %v27, 0.0
  %v902 = vsel %vm846, %v28, 0.0
  %v903 = vsel %vm847, %v22, 0.0
  %v904 = vsel %vm848, %v23, 0.0
  %v905 = vsel %vm849, %v24, 0.0
  %v906 = vsel %vm850, %v25, 0.0
  %v907 = vsel %vm851, %v26, 0.0
  %v908 = vsel %vm852, %v27, 0.0
  %v909 = vsel %vm853, %v28, 0.0
  %v910 = vsel %vm854, %v22, 0.0
  %v911 = vsel %vm855, %v23, 0.0
  %v912 = vsel %vm856, %v24, 0.0
  %v913 = vsel %vm857, %v25, 0.0
  %v914 = vsel %vm858, %v26, 0.0
  %v915 = vsel %vm859, %v27, 0.0
  %v916 = vsel %vm860, %v28, 0.0
  %v917 = vsel %vm258, %v861, 0.0
  %v918 = vsel %vm258, %v862, 0.0
  %v919 = vadd.f32 %v917, %v918
  %v920 = vsel %vm258, %v863, 0.0
  %v921 = vadd.f32 %v919, %v920
  %v922 = vsel %vm258, %v864, 0.0
  %v923 = vadd.f32 %v921, %v922
  %v924 = vsel %vm258, %v865, 0.0
  %v925 = vadd.f32 %v923, %v924
  %v926 = vsel %vm258, %v866, 0.0
  %v927 = vadd.f32 %v925, %v926
  %v928 = vsel %vm270, %v867, 0.0
  %v929 = vadd.f32 %v927, %v928
  %v930 = vrot.slane %v929, 4
  %v931 = vadd.f32 %v929, %v930
  %v932 = vrot.slane %v931, 2
  %v933 = vadd.f32 %v931, %v932
  %v934 = vrot.slane %v933, 1
  %v935 = vadd.f32 %v933, %v934
  %v936 = vsel %vm258, %v868, 0.0
  %v937 = vsel %vm258, %v869, 0.0
  %v938 = vadd.f32 %v936, %v937
  %v939 = vsel %vm258, %v870, 0.0
  %v940 = vadd.f32 %v938, %v939
  %v941 = vsel %vm258, %v871, 0.0
  %v942 = vadd.f32 %v940, %v941
  %v943 = vsel %vm258, %v872, 0.0
  %v944 = vadd.f32 %v942, %v943
  %v945 = vsel %vm258, %v873, 0.0
  %v946 = vadd.f32 %v944, %v945
  %v947 = vsel %vm270, %v874, 0.0
  %v948 = vadd.f32 %v946, %v947
  %v949 = vrot.slane %v948, 4
  %v950 = vadd.f32 %v948, %v949
  %v951 = vrot.slane %v950, 2
  %v952 = vadd.f32 %v950, %v951
  %v953 = vrot.slane %v952, 1
  %v954 = vadd.f32 %v952, %v953
  %v955 = vsel %vm258, %v875, 0.0
  %v956 = vsel %vm258, %v876, 0.0
  %v957 = vadd.f32 %v955, %v956
  %v958 = vsel %vm258, %v877, 0.0
  %v959 = vadd.f32 %v957, %v958
  %v960 = vsel %vm258, %v878, 0.0
  %v961 = vadd.f32 %v959, %v960
  %v962 = vsel %vm258, %v879, 0.0
  %v963 = vadd.f32 %v961, %v962
  %v964 = vsel %vm258, %v880, 0.0
  %v965 = vadd.f32 %v963, %v964
  %v966 = vsel %vm270, %v881, 0.0
  %v967 = vadd.f32 %v965, %v966
  %v968 = vrot.slane %v967, 4
  %v969 = vadd.f32 %v967, %v968
  %v970 = vrot.slane %v969, 2
  %v971 = vadd.f32 %v969, %v970
  %v972 = vrot.slane %v971, 1
  %v973 = vadd.f32 %v971, %v972
  %v974 = vsel %vm258, %v882, 0.0
  %v975 = vsel %vm258, %v883, 0.0
  %v976 = vadd.f32 %v974, %v975
  %v977 = vsel %vm258, %v884, 0.0
  %v978 = vadd.f32 %v976, %v977
  %v979 = vsel %vm258, %v885, 0.0
  %v980 = vadd.f32 %v978, %v979
  %v981 = vsel %vm258, %v886, 0.0
  %v982 = vadd.f32 %v980, %v981
  %v983 = vsel %vm258, %v887, 0.0
  %v984 = vadd.f32 %v982, %v983
  %v985 = vsel %vm270, %v888, 0.0
  %v986 = vadd.f32 %v984, %v985
  %v987 = vrot.slane %v986, 4
  %v988 = vadd.f32 %v986, %v987
  %v989 = vrot.slane %v988, 2
  %v990 = vadd.f32 %v988, %v989
  %v991 = vrot.slane %v990, 1
  %v992 = vadd.f32 %v990, %v991
  %v993 = vsel %vm258, %v889, 0.0
  %v994 = vsel %vm258, %v890, 0.0
  %v995 = vadd.f32 %v993, %v994
  %v996 = vsel %vm258, %v891, 0.0
  %v997 = vadd.f32 %v995, %v996
  %v998 = vsel %vm258, %v892, 0.0
  %v999 = vadd.f32 %v997, %v998
  %v1000 = vsel %vm258, %v893, 0.0
  %v1001 = vadd.f32 %v999, %v1000
  %v1002 = vsel %vm258, %v894, 0.0
  %v1003 = vadd.f32 %v1001, %v1002
  %v1004 = vsel %vm270, %v895, 0.0
  %v1005 = vadd.f32 %v1003, %v1004
  %v1006 = vrot.slane %v1005, 4
  %v1007 = vadd.f32 %v1005, %v1006
  %v1008 = vrot.slane %v1007, 2
  %v1009 = vadd.f32 %v1007, %v1008
  %v1010 = vrot.slane %v1009, 1
  %v1011 = vadd.f32 %v1009, %v1010
  %v1012 = vsel %vm258, %v896, 0.0
  %v1013 = vsel %vm258, %v897, 0.0
  %v1014 = vadd.f32 %v1012, %v1013
  %v1015 = vsel %vm258, %v898, 0.0
  %v1016 = vadd.f32 %v1014, %v1015
  %v1017 = vsel %vm258, %v899, 0.0
  %v1018 = vadd.f32 %v1016, %v1017
  %v1019 = vsel %vm258, %v900, 0.0
  %v1020 = vadd.f32 %v1018, %v1019
  %v1021 = vsel %vm258, %v901, 0.0
  %v1022 = vadd.f32 %v1020, %v1021
  %v1023 = vsel %vm270, %v902, 0.0
  %v1024 = vadd.f32 %v1022, %v1023
  %v1025 = vrot.slane %v1024, 4
  %v1026 = vadd.f32 %v1024, %v1025
  %v1027 = vrot.slane %v1026, 2
  %v1028 = vadd.f32 %v1026, %v1027
  %v1029 = vrot.slane %v1028, 1
  %v1030 = vadd.f32 %v1028, %v1029
  %v1031 = vsel %vm258, %v903, 0.0
  %v1032 = vsel %vm258, %v904, 0.0
  %v1033 = vadd.f32 %v1031, %v1032
  %v1034 = vsel %vm258, %v905, 0.0
  %v1035 = vadd.f32 %v1033, %v1034
  %v1036 = vsel %vm258, %v906, 0.0
  %v1037 = vadd.f32 %v1035, %v1036
  %v1038 = vsel %vm258, %v907, 0.0
  %v1039 = vadd.f32 %v1037, %v1038
  %v1040 = vsel %vm258, %v908, 0.0
  %v1041 = vadd.f32 %v1039, %v1040
  %v1042 = vsel %vm270, %v909, 0.0
  %v1043 = vadd.f32 %v1041, %v1042
  %v1044 = vrot.slane %v1043, 4
  %v1045 = vadd.f32 %v1043, %v1044
  %v1046 = vrot.slane %v1045, 2
  %v1047 = vadd.f32 %v1045, %v1046
  %v1048 = vrot.slane %v1047, 1
  %v1049 = vadd.f32 %v1047, %v1048
  %v1050 = vsel %vm258, %v910, 0.0
  %v1051 = vsel %vm258, %v911, 0.0
  %v1052 = vadd.f32 %v1050, %v1051
  %v1053 = vsel %vm258, %v912, 0.0
  %v1054 = vadd.f32 %v1052, %v1053
  %v1055 = vsel %vm258, %v913, 0.0
  %v1056 = vadd.f32 %v1054, %v1055
  %v1057 = vsel %vm258, %v914, 0.0
  %v1058 = vadd.f32 %v1056, %v1057
  %v1059 = vsel %vm258, %v915, 0.0
  %v1060 = vadd.f32 %v1058, %v1059
  %v1061 = vsel %vm270, %v916, 0.0
  %v1062 = vadd.f32 %v1060, %v1061
  %v1063 = vrot.slane %v1062, 4
  %v1064 = vadd.f32 %v1062, %v1063
  %v1065 = vrot.slane %v1064, 2
  %v1066 = vadd.f32 %v1064, %v1065
  %v1067 = vrot.slane %v1066, 1
  %v1068 = vadd.f32 %v1066, %v1067
  %1069 = vset.pattern.permute.xlu0 2
  %1070 = vperm.xlu0 %1069, %v752
  %v1071 = vpop.permute.xlu0 %1070
  %1072 = vset.pattern.permute.xlu0 2
  %1073 = vperm.xlu0 %1072, %v756
  %v1074 = vpop.permute.xlu0 %1073
  %1075 = vset.pattern.permute.xlu0 2
  %1076 = vperm.xlu0 %1075, %v760
  %v1077 = vpop.permute.xlu0 %1076
  %1078 = vset.pattern.permute.xlu0 2
  %1079 = vperm.xlu0 %1078, %v764
  %v1080 = vpop.permute.xlu0 %1079
  %1081 = vset.pattern.permute.xlu0 2
  %1082 = vperm.xlu0 %1081, %v768
  %v1083 = vpop.permute.xlu0 %1082
  %1084 = vset.pattern.permute.xlu0 2
  %1085 = vperm.xlu0 %1084, %v772
  %v1086 = vpop.permute.xlu0 %1085
  %1087 = vset.pattern.permute.xlu0 2
  %1088 = vperm.xlu0 %1087, %v776
  %v1089 = vpop.permute.xlu0 %1088
  %1090 = vset.pattern.permute.xlu0 2
  %1091 = vperm.xlu0 %1090, %v780
  %v1092 = vpop.permute.xlu0 %1091
  %vm1093 = vcmp.eq.s32.totalorder %v34, %v1071
  %vm1094 = vcmp.eq.s32.totalorder %v35, %v1071
  %vm1095 = vcmp.eq.s32.totalorder %v36, %v1071
  %vm1096 = vcmp.eq.s32.totalorder %v37, %v1071
  %vm1097 = vcmp.eq.s32.totalorder %v38, %v1071
  %vm1098 = vcmp.eq.s32.totalorder %v39, %v1071
  %vm1099 = vcmp.eq.s32.totalorder %v40, %v1071
  %vm1100 = vcmp.eq.s32.totalorder %v34, %v1074
  %vm1101 = vcmp.eq.s32.totalorder %v35, %v1074
  %vm1102 = vcmp.eq.s32.totalorder %v36, %v1074
  %vm1103 = vcmp.eq.s32.totalorder %v37, %v1074
  %vm1104 = vcmp.eq.s32.totalorder %v38, %v1074
  %vm1105 = vcmp.eq.s32.totalorder %v39, %v1074
  %vm1106 = vcmp.eq.s32.totalorder %v40, %v1074
  %vm1107 = vcmp.eq.s32.totalorder %v34, %v1077
  %vm1108 = vcmp.eq.s32.totalorder %v35, %v1077
  %vm1109 = vcmp.eq.s32.totalorder %v36, %v1077
  %vm1110 = vcmp.eq.s32.totalorder %v37, %v1077
  %vm1111 = vcmp.eq.s32.totalorder %v38, %v1077
  %vm1112 = vcmp.eq.s32.totalorder %v39, %v1077
  %vm1113 = vcmp.eq.s32.totalorder %v40, %v1077
  %vm1114 = vcmp.eq.s32.totalorder %v34, %v1080
  %vm1115 = vcmp.eq.s32.totalorder %v35, %v1080
  %vm1116 = vcmp.eq.s32.totalorder %v36, %v1080
  %vm1117 = vcmp.eq.s32.totalorder %v37, %v1080
  %vm1118 = vcmp.eq.s32.totalorder %v38, %v1080
  %vm1119 = vcmp.eq.s32.totalorder %v39, %v1080
  %vm1120 = vcmp.eq.s32.totalorder %v40, %v1080
  %vm1121 = vcmp.eq.s32.totalorder %v34, %v1083
  %vm1122 = vcmp.eq.s32.totalorder %v35, %v1083
  %vm1123 = vcmp.eq.s32.totalorder %v36, %v1083
  %vm1124 = vcmp.eq.s32.totalorder %v37, %v1083
  %vm1125 = vcmp.eq.s32.totalorder %v38, %v1083
  %vm1126 = vcmp.eq.s32.totalorder %v39, %v1083
  %vm1127 = vcmp.eq.s32.totalorder %v40, %v1083
  %vm1128 = vcmp.eq.s32.totalorder %v34, %v1086
  %vm1129 = vcmp.eq.s32.totalorder %v35, %v1086
  %vm1130 = vcmp.eq.s32.totalorder %v36, %v1086
  %vm1131 = vcmp.eq.s32.totalorder %v37, %v1086
  %vm1132 = vcmp.eq.s32.totalorder %v38, %v1086
  %vm1133 = vcmp.eq.s32.totalorder %v39, %v1086
  %vm1134 = vcmp.eq.s32.totalorder %v40, %v1086
  %vm1135 = vcmp.eq.s32.totalorder %v34, %v1089
  %vm1136 = vcmp.eq.s32.totalorder %v35, %v1089
  %vm1137 = vcmp.eq.s32.totalorder %v36, %v1089
  %vm1138 = vcmp.eq.s32.totalorder %v37, %v1089
  %vm1139 = vcmp.eq.s32.totalorder %v38, %v1089
  %vm1140 = vcmp.eq.s32.totalorder %v39, %v1089
  %vm1141 = vcmp.eq.s32.totalorder %v40, %v1089
  %vm1142 = vcmp.eq.s32.totalorder %v34, %v1092
  %vm1143 = vcmp.eq.s32.totalorder %v35, %v1092
  %vm1144 = vcmp.eq.s32.totalorder %v36, %v1092
  %vm1145 = vcmp.eq.s32.totalorder %v37, %v1092
  %vm1146 = vcmp.eq.s32.totalorder %v38, %v1092
  %vm1147 = vcmp.eq.s32.totalorder %v39, %v1092
  %vm1148 = vcmp.eq.s32.totalorder %v40, %v1092
  %v1149 = vsel %vm1093, %v22, 0.0
  %v1150 = vsel %vm1094, %v23, 0.0
  %v1151 = vsel %vm1095, %v24, 0.0
  %v1152 = vsel %vm1096, %v25, 0.0
  %v1153 = vsel %vm1097, %v26, 0.0
  %v1154 = vsel %vm1098, %v27, 0.0
  %v1155 = vsel %vm1099, %v28, 0.0
  %v1156 = vsel %vm1100, %v22, 0.0
  %v1157 = vsel %vm1101, %v23, 0.0
  %v1158 = vsel %vm1102, %v24, 0.0
  %v1159 = vsel %vm1103, %v25, 0.0
  %v1160 = vsel %vm1104, %v26, 0.0
  %v1161 = vsel %vm1105, %v27, 0.0
  %v1162 = vsel %vm1106, %v28, 0.0
  %v1163 = vsel %vm1107, %v22, 0.0
  %v1164 = vsel %vm1108, %v23, 0.0
  %v1165 = vsel %vm1109, %v24, 0.0
  %v1166 = vsel %vm1110, %v25, 0.0
  %v1167 = vsel %vm1111, %v26, 0.0
  %v1168 = vsel %vm1112, %v27, 0.0
  %v1169 = vsel %vm1113, %v28, 0.0
  %v1170 = vsel %vm1114, %v22, 0.0
  %v1171 = vsel %vm1115, %v23, 0.0
  %v1172 = vsel %vm1116, %v24, 0.0
  %v1173 = vsel %vm1117, %v25, 0.0
  %v1174 = vsel %vm1118, %v26, 0.0
  %v1175 = vsel %vm1119, %v27, 0.0
  %v1176 = vsel %vm1120, %v28, 0.0
  %v1177 = vsel %vm1121, %v22, 0.0
  %v1178 = vsel %vm1122, %v23, 0.0
  %v1179 = vsel %vm1123, %v24, 0.0
  %v1180 = vsel %vm1124, %v25, 0.0
  %v1181 = vsel %vm1125, %v26, 0.0
  %v1182 = vsel %vm1126, %v27, 0.0
  %v1183 = vsel %vm1127, %v28, 0.0
  %v1184 = vsel %vm1128, %v22, 0.0
  %v1185 = vsel %vm1129, %v23, 0.0
  %v1186 = vsel %vm1130, %v24, 0.0
  %v1187 = vsel %vm1131, %v25, 0.0
  %v1188 = vsel %vm1132, %v26, 0.0
  %v1189 = vsel %vm1133, %v27, 0.0
  %v1190 = vsel %vm1134, %v28, 0.0
  %v1191 = vsel %vm1135, %v22, 0.0
  %v1192 = vsel %vm1136, %v23, 0.0
  %v1193 = vsel %vm1137, %v24, 0.0
  %v1194 = vsel %vm1138, %v25, 0.0
  %v1195 = vsel %vm1139, %v26, 0.0
  %v1196 = vsel %vm1140, %v27, 0.0
  %v1197 = vsel %vm1141, %v28, 0.0
  %v1198 = vsel %vm1142, %v22, 0.0
  %v1199 = vsel %vm1143, %v23, 0.0
  %v1200 = vsel %vm1144, %v24, 0.0
  %v1201 = vsel %vm1145, %v25, 0.0
  %v1202 = vsel %vm1146, %v26, 0.0
  %v1203 = vsel %vm1147, %v27, 0.0
  %v1204 = vsel %vm1148, %v28, 0.0
  %v1205 = vsel %vm258, %v1149, 0.0
  %v1206 = vsel %vm258, %v1150, 0.0
  %v1207 = vadd.f32 %v1205, %v1206
  %v1208 = vsel %vm258, %v1151, 0.0
  %v1209 = vadd.f32 %v1207, %v1208
  %v1210 = vsel %vm258, %v1152, 0.0
  %v1211 = vadd.f32 %v1209, %v1210
  %v1212 = vsel %vm258, %v1153, 0.0
  %v1213 = vadd.f32 %v1211, %v1212
  %v1214 = vsel %vm258, %v1154, 0.0
  %v1215 = vadd.f32 %v1213, %v1214
  %v1216 = vsel %vm270, %v1155, 0.0
  %v1217 = vadd.f32 %v1215, %v1216
  %v1218 = vrot.slane %v1217, 4
  %v1219 = vadd.f32 %v1217, %v1218
  %v1220 = vrot.slane %v1219, 2
  %v1221 = vadd.f32 %v1219, %v1220
  %v1222 = vrot.slane %v1221, 1
  %v1223 = vadd.f32 %v1221, %v1222
  %v1224 = vsel %vm258, %v1156, 0.0
  %v1225 = vsel %vm258, %v1157, 0.0
  %v1226 = vadd.f32 %v1224, %v1225
  %v1227 = vsel %vm258, %v1158, 0.0
  %v1228 = vadd.f32 %v1226, %v1227
  %v1229 = vsel %vm258, %v1159, 0.0
  %v1230 = vadd.f32 %v1228, %v1229
  %v1231 = vsel %vm258, %v1160, 0.0
  %v1232 = vadd.f32 %v1230, %v1231
  %v1233 = vsel %vm258, %v1161, 0.0
  %v1234 = vadd.f32 %v1232, %v1233
  %v1235 = vsel %vm270, %v1162, 0.0
  %v1236 = vadd.f32 %v1234, %v1235
  %v1237 = vrot.slane %v1236, 4
  %v1238 = vadd.f32 %v1236, %v1237
  %v1239 = vrot.slane %v1238, 2
  %v1240 = vadd.f32 %v1238, %v1239
  %v1241 = vrot.slane %v1240, 1
  %v1242 = vadd.f32 %v1240, %v1241
  %v1243 = vsel %vm258, %v1163, 0.0
  %v1244 = vsel %vm258, %v1164, 0.0
  %v1245 = vadd.f32 %v1243, %v1244
  %v1246 = vsel %vm258, %v1165, 0.0
  %v1247 = vadd.f32 %v1245, %v1246
  %v1248 = vsel %vm258, %v1166, 0.0
  %v1249 = vadd.f32 %v1247, %v1248
  %v1250 = vsel %vm258, %v1167, 0.0
  %v1251 = vadd.f32 %v1249, %v1250
  %v1252 = vsel %vm258, %v1168, 0.0
  %v1253 = vadd.f32 %v1251, %v1252
  %v1254 = vsel %vm270, %v1169, 0.0
  %v1255 = vadd.f32 %v1253, %v1254
  %v1256 = vrot.slane %v1255, 4
  %v1257 = vadd.f32 %v1255, %v1256
  %v1258 = vrot.slane %v1257, 2
  %v1259 = vadd.f32 %v1257, %v1258
  %v1260 = vrot.slane %v1259, 1
  %v1261 = vadd.f32 %v1259, %v1260
  %v1262 = vsel %vm258, %v1170, 0.0
  %v1263 = vsel %vm258, %v1171, 0.0
  %v1264 = vadd.f32 %v1262, %v1263
  %v1265 = vsel %vm258, %v1172, 0.0
  %v1266 = vadd.f32 %v1264, %v1265
  %v1267 = vsel %vm258, %v1173, 0.0
  %v1268 = vadd.f32 %v1266, %v1267
  %v1269 = vsel %vm258, %v1174, 0.0
  %v1270 = vadd.f32 %v1268, %v1269
  %v1271 = vsel %vm258, %v1175, 0.0
  %v1272 = vadd.f32 %v1270, %v1271
  %v1273 = vsel %vm270, %v1176, 0.0
  %v1274 = vadd.f32 %v1272, %v1273
  %v1275 = vrot.slane %v1274, 4
  %v1276 = vadd.f32 %v1274, %v1275
  %v1277 = vrot.slane %v1276, 2
  %v1278 = vadd.f32 %v1276, %v1277
  %v1279 = vrot.slane %v1278, 1
  %v1280 = vadd.f32 %v1278, %v1279
  %v1281 = vsel %vm258, %v1177, 0.0
  %v1282 = vsel %vm258, %v1178, 0.0
  %v1283 = vadd.f32 %v1281, %v1282
  %v1284 = vsel %vm258, %v1179, 0.0
  %v1285 = vadd.f32 %v1283, %v1284
  %v1286 = vsel %vm258, %v1180, 0.0
  %v1287 = vadd.f32 %v1285, %v1286
  %v1288 = vsel %vm258, %v1181, 0.0
  %v1289 = vadd.f32 %v1287, %v1288
  %v1290 = vsel %vm258, %v1182, 0.0
  %v1291 = vadd.f32 %v1289, %v1290
  %v1292 = vsel %vm270, %v1183, 0.0
  %v1293 = vadd.f32 %v1291, %v1292
  %v1294 = vrot.slane %v1293, 4
  %v1295 = vadd.f32 %v1293, %v1294
  %v1296 = vrot.slane %v1295, 2
  %v1297 = vadd.f32 %v1295, %v1296
  %v1298 = vrot.slane %v1297, 1
  %v1299 = vadd.f32 %v1297, %v1298
  %v1300 = vsel %vm258, %v1184, 0.0
  %v1301 = vsel %vm258, %v1185, 0.0
  %v1302 = vadd.f32 %v1300, %v1301
  %v1303 = vsel %vm258, %v1186, 0.0
  %v1304 = vadd.f32 %v1302, %v1303
  %v1305 = vsel %vm258, %v1187, 0.0
  %v1306 = vadd.f32 %v1304, %v1305
  %v1307 = vsel %vm258, %v1188, 0.0
  %v1308 = vadd.f32 %v1306, %v1307
  %v1309 = vsel %vm258, %v1189, 0.0
  %v1310 = vadd.f32 %v1308, %v1309
  %v1311 = vsel %vm270, %v1190, 0.0
  %v1312 = vadd.f32 %v1310, %v1311
  %v1313 = vrot.slane %v1312, 4
  %v1314 = vadd.f32 %v1312, %v1313
  %v1315 = vrot.slane %v1314, 2
  %v1316 = vadd.f32 %v1314, %v1315
  %v1317 = vrot.slane %v1316, 1
  %v1318 = vadd.f32 %v1316, %v1317
  %v1319 = vsel %vm258, %v1191, 0.0
  %v1320 = vsel %vm258, %v1192, 0.0
  %v1321 = vadd.f32 %v1319, %v1320
  %v1322 = vsel %vm258, %v1193, 0.0
  %v1323 = vadd.f32 %v1321, %v1322
  %v1324 = vsel %vm258, %v1194, 0.0
  %v1325 = vadd.f32 %v1323, %v1324
  %v1326 = vsel %vm258, %v1195, 0.0
  %v1327 = vadd.f32 %v1325, %v1326
  %v1328 = vsel %vm258, %v1196, 0.0
  %v1329 = vadd.f32 %v1327, %v1328
  %v1330 = vsel %vm270, %v1197, 0.0
  %v1331 = vadd.f32 %v1329, %v1330
  %v1332 = vrot.slane %v1331, 4
  %v1333 = vadd.f32 %v1331, %v1332
  %v1334 = vrot.slane %v1333, 2
  %v1335 = vadd.f32 %v1333, %v1334
  %v1336 = vrot.slane %v1335, 1
  %v1337 = vadd.f32 %v1335, %v1336
  %v1338 = vsel %vm258, %v1198, 0.0
  %v1339 = vsel %vm258, %v1199, 0.0
  %v1340 = vadd.f32 %v1338, %v1339
  %v1341 = vsel %vm258, %v1200, 0.0
  %v1342 = vadd.f32 %v1340, %v1341
  %v1343 = vsel %vm258, %v1201, 0.0
  %v1344 = vadd.f32 %v1342, %v1343
  %v1345 = vsel %vm258, %v1202, 0.0
  %v1346 = vadd.f32 %v1344, %v1345
  %v1347 = vsel %vm258, %v1203, 0.0
  %v1348 = vadd.f32 %v1346, %v1347
  %v1349 = vsel %vm270, %v1204, 0.0
  %v1350 = vadd.f32 %v1348, %v1349
  %v1351 = vrot.slane %v1350, 4
  %v1352 = vadd.f32 %v1350, %v1351
  %v1353 = vrot.slane %v1352, 2
  %v1354 = vadd.f32 %v1352, %v1353
  %v1355 = vrot.slane %v1354, 1
  %v1356 = vadd.f32 %v1354, %v1355
  %1357 = vset.pattern.permute.xlu0 1
  %1358 = vperm.xlu0 %1357, %v93
  %v1359 = vpop.permute.xlu0 %1358
  %1360 = vset.pattern.permute.xlu0 1
  %1361 = vperm.xlu0 %1360, %v97
  %v1362 = vpop.permute.xlu0 %1361
  %1363 = vset.pattern.permute.xlu0 1
  %1364 = vperm.xlu0 %1363, %v101
  %v1365 = vpop.permute.xlu0 %1364
  %1366 = vset.pattern.permute.xlu0 1
  %1367 = vperm.xlu0 %1366, %v105
  %v1368 = vpop.permute.xlu0 %1367
  %1369 = vset.pattern.permute.xlu0 1
  %1370 = vperm.xlu0 %1369, %v109
  %v1371 = vpop.permute.xlu0 %1370
  %1372 = vset.pattern.permute.xlu0 1
  %1373 = vperm.xlu0 %1372, %v113
  %v1374 = vpop.permute.xlu0 %1373
  %1375 = vset.pattern.permute.xlu0 1
  %1376 = vperm.xlu0 %1375, %v117
  %v1377 = vpop.permute.xlu0 %1376
  %1378 = vset.pattern.permute.xlu0 1
  %1379 = vperm.xlu0 %1378, %v121
  %v1380 = vpop.permute.xlu0 %1379
  %vm1381 = vcmp.eq.s32.totalorder %v34, %v1359
  %vm1382 = vcmp.eq.s32.totalorder %v35, %v1359
  %vm1383 = vcmp.eq.s32.totalorder %v34, %v1362
  %vm1384 = vcmp.eq.s32.totalorder %v35, %v1362
  %vm1385 = vcmp.eq.s32.totalorder %v34, %v1365
  %vm1386 = vcmp.eq.s32.totalorder %v35, %v1365
  %vm1387 = vcmp.eq.s32.totalorder %v34, %v1368
  %vm1388 = vcmp.eq.s32.totalorder %v35, %v1368
  %vm1389 = vcmp.eq.s32.totalorder %v34, %v1371
  %vm1390 = vcmp.eq.s32.totalorder %v35, %v1371
  %vm1391 = vcmp.eq.s32.totalorder %v34, %v1374
  %vm1392 = vcmp.eq.s32.totalorder %v35, %v1374
  %vm1393 = vcmp.eq.s32.totalorder %v34, %v1377
  %vm1394 = vcmp.eq.s32.totalorder %v35, %v1377
  %vm1395 = vcmp.eq.s32.totalorder %v34, %v1380
  %vm1396 = vcmp.eq.s32.totalorder %v35, %v1380
  %v1397 = vsel %vm1381, %v31, 0.0
  %v1398 = vsel %vm1382, %v32, 0.0
  %v1399 = vsel %vm1383, %v31, 0.0
  %v1400 = vsel %vm1384, %v32, 0.0
  %v1401 = vsel %vm1385, %v31, 0.0
  %v1402 = vsel %vm1386, %v32, 0.0
  %v1403 = vsel %vm1387, %v31, 0.0
  %v1404 = vsel %vm1388, %v32, 0.0
  %v1405 = vsel %vm1389, %v31, 0.0
  %v1406 = vsel %vm1390, %v32, 0.0
  %v1407 = vsel %vm1391, %v31, 0.0
  %v1408 = vsel %vm1392, %v32, 0.0
  %v1409 = vsel %vm1393, %v31, 0.0
  %v1410 = vsel %vm1394, %v32, 0.0
  %v1411 = vsel %vm1395, %v31, 0.0
  %v1412 = vsel %vm1396, %v32, 0.0
  %v1413 = vsel %vm258, %v1397, 0.0
  %v1414 = vsel %vm270, %v1398, 0.0
  %v1415 = vadd.f32 %v1413, %v1414
  %v1416 = vrot.slane %v1415, 4
  %v1417 = vadd.f32 %v1415, %v1416
  %v1418 = vrot.slane %v1417, 2
  %v1419 = vadd.f32 %v1417, %v1418
  %v1420 = vrot.slane %v1419, 1
  %v1421 = vadd.f32 %v1419, %v1420
  %v1422 = vsel %vm258, %v1399, 0.0
  %v1423 = vsel %vm270, %v1400, 0.0
  %v1424 = vadd.f32 %v1422, %v1423
  %v1425 = vrot.slane %v1424, 4
  %v1426 = vadd.f32 %v1424, %v1425
  %v1427 = vrot.slane %v1426, 2
  %v1428 = vadd.f32 %v1426, %v1427
  %v1429 = vrot.slane %v1428, 1
  %v1430 = vadd.f32 %v1428, %v1429
  %v1431 = vsel %vm258, %v1401, 0.0
  %v1432 = vsel %vm270, %v1402, 0.0
  %v1433 = vadd.f32 %v1431, %v1432
  %v1434 = vrot.slane %v1433, 4
  %v1435 = vadd.f32 %v1433, %v1434
  %v1436 = vrot.slane %v1435, 2
  %v1437 = vadd.f32 %v1435, %v1436
  %v1438 = vrot.slane %v1437, 1
  %v1439 = vadd.f32 %v1437, %v1438
  %v1440 = vsel %vm258, %v1403, 0.0
  %v1441 = vsel %vm270, %v1404, 0.0
  %v1442 = vadd.f32 %v1440, %v1441
  %v1443 = vrot.slane %v1442, 4
  %v1444 = vadd.f32 %v1442, %v1443
  %v1445 = vrot.slane %v1444, 2
  %v1446 = vadd.f32 %v1444, %v1445
  %v1447 = vrot.slane %v1446, 1
  %v1448 = vadd.f32 %v1446, %v1447
  %v1449 = vsel %vm258, %v1405, 0.0
  %v1450 = vsel %vm270, %v1406, 0.0
  %v1451 = vadd.f32 %v1449, %v1450
  %v1452 = vrot.slane %v1451, 4
  %v1453 = vadd.f32 %v1451, %v1452
  %v1454 = vrot.slane %v1453, 2
  %v1455 = vadd.f32 %v1453, %v1454
  %v1456 = vrot.slane %v1455, 1
  %v1457 = vadd.f32 %v1455, %v1456
  %v1458 = vsel %vm258, %v1407, 0.0
  %v1459 = vsel %vm270, %v1408, 0.0
  %v1460 = vadd.f32 %v1458, %v1459
  %v1461 = vrot.slane %v1460, 4
  %v1462 = vadd.f32 %v1460, %v1461
  %v1463 = vrot.slane %v1462, 2
  %v1464 = vadd.f32 %v1462, %v1463
  %v1465 = vrot.slane %v1464, 1
  %v1466 = vadd.f32 %v1464, %v1465
  %v1467 = vsel %vm258, %v1409, 0.0
  %v1468 = vsel %vm270, %v1410, 0.0
  %v1469 = vadd.f32 %v1467, %v1468
  %v1470 = vrot.slane %v1469, 4
  %v1471 = vadd.f32 %v1469, %v1470
  %v1472 = vrot.slane %v1471, 2
  %v1473 = vadd.f32 %v1471, %v1472
  %v1474 = vrot.slane %v1473, 1
  %v1475 = vadd.f32 %v1473, %v1474
  %v1476 = vsel %vm258, %v1411, 0.0
  %v1477 = vsel %vm270, %v1412, 0.0
  %v1478 = vadd.f32 %v1476, %v1477
  %v1479 = vrot.slane %v1478, 4
  %v1480 = vadd.f32 %v1478, %v1479
  %v1481 = vrot.slane %v1480, 2
  %v1482 = vadd.f32 %v1480, %v1481
  %v1483 = vrot.slane %v1482, 1
  %v1484 = vadd.f32 %v1482, %v1483
  %v1485 = vsel %vm1381, %v29, 0.0
  %v1486 = vsel %vm1382, %v30, 0.0
  %v1487 = vsel %vm1383, %v29, 0.0
  %v1488 = vsel %vm1384, %v30, 0.0
  %v1489 = vsel %vm1385, %v29, 0.0
  %v1490 = vsel %vm1386, %v30, 0.0
  %v1491 = vsel %vm1387, %v29, 0.0
  %v1492 = vsel %vm1388, %v30, 0.0
  %v1493 = vsel %vm1389, %v29, 0.0
  %v1494 = vsel %vm1390, %v30, 0.0
  %v1495 = vsel %vm1391, %v29, 0.0
  %v1496 = vsel %vm1392, %v30, 0.0
  %v1497 = vsel %vm1393, %v29, 0.0
  %v1498 = vsel %vm1394, %v30, 0.0
  %v1499 = vsel %vm1395, %v29, 0.0
  %v1500 = vsel %vm1396, %v30, 0.0
  %v1501 = vsel %vm258, %v1485, 0.0
  %v1502 = vsel %vm270, %v1486, 0.0
  %v1503 = vadd.f32 %v1501, %v1502
  %v1504 = vrot.slane %v1503, 4
  %v1505 = vadd.f32 %v1503, %v1504
  %v1506 = vrot.slane %v1505, 2
  %v1507 = vadd.f32 %v1505, %v1506
  %v1508 = vrot.slane %v1507, 1
  %v1509 = vadd.f32 %v1507, %v1508
  %v1510 = vsel %vm258, %v1487, 0.0
  %v1511 = vsel %vm270, %v1488, 0.0
  %v1512 = vadd.f32 %v1510, %v1511
  %v1513 = vrot.slane %v1512, 4
  %v1514 = vadd.f32 %v1512, %v1513
  %v1515 = vrot.slane %v1514, 2
  %v1516 = vadd.f32 %v1514, %v1515
  %v1517 = vrot.slane %v1516, 1
  %v1518 = vadd.f32 %v1516, %v1517
  %v1519 = vsel %vm258, %v1489, 0.0
  %v1520 = vsel %vm270, %v1490, 0.0
  %v1521 = vadd.f32 %v1519, %v1520
  %v1522 = vrot.slane %v1521, 4
  %v1523 = vadd.f32 %v1521, %v1522
  %v1524 = vrot.slane %v1523, 2
  %v1525 = vadd.f32 %v1523, %v1524
  %v1526 = vrot.slane %v1525, 1
  %v1527 = vadd.f32 %v1525, %v1526
  %v1528 = vsel %vm258, %v1491, 0.0
  %v1529 = vsel %vm270, %v1492, 0.0
  %v1530 = vadd.f32 %v1528, %v1529
  %v1531 = vrot.slane %v1530, 4
  %v1532 = vadd.f32 %v1530, %v1531
  %v1533 = vrot.slane %v1532, 2
  %v1534 = vadd.f32 %v1532, %v1533
  %v1535 = vrot.slane %v1534, 1
  %v1536 = vadd.f32 %v1534, %v1535
  %v1537 = vsel %vm258, %v1493, 0.0
  %v1538 = vsel %vm270, %v1494, 0.0
  %v1539 = vadd.f32 %v1537, %v1538
  %v1540 = vrot.slane %v1539, 4
  %v1541 = vadd.f32 %v1539, %v1540
  %v1542 = vrot.slane %v1541, 2
  %v1543 = vadd.f32 %v1541, %v1542
  %v1544 = vrot.slane %v1543, 1
  %v1545 = vadd.f32 %v1543, %v1544
  %v1546 = vsel %vm258, %v1495, 0.0
  %v1547 = vsel %vm270, %v1496, 0.0
  %v1548 = vadd.f32 %v1546, %v1547
  %v1549 = vrot.slane %v1548, 4
  %v1550 = vadd.f32 %v1548, %v1549
  %v1551 = vrot.slane %v1550, 2
  %v1552 = vadd.f32 %v1550, %v1551
  %v1553 = vrot.slane %v1552, 1
  %v1554 = vadd.f32 %v1552, %v1553
  %v1555 = vsel %vm258, %v1497, 0.0
  %v1556 = vsel %vm270, %v1498, 0.0
  %v1557 = vadd.f32 %v1555, %v1556
  %v1558 = vrot.slane %v1557, 4
  %v1559 = vadd.f32 %v1557, %v1558
  %v1560 = vrot.slane %v1559, 2
  %v1561 = vadd.f32 %v1559, %v1560
  %v1562 = vrot.slane %v1561, 1
  %v1563 = vadd.f32 %v1561, %v1562
  %v1564 = vsel %vm258, %v1499, 0.0
  %v1565 = vsel %vm270, %v1500, 0.0
  %v1566 = vadd.f32 %v1564, %v1565
  %v1567 = vrot.slane %v1566, 4
  %v1568 = vadd.f32 %v1566, %v1567
  %v1569 = vrot.slane %v1568, 2
  %v1570 = vadd.f32 %v1568, %v1569
  %v1571 = vrot.slane %v1570, 1
  %v1572 = vadd.f32 %v1570, %v1571
  %v1573 = vsub.f32 %v278, %v566
  %v1574 = vsub.f32 %v297, %v585
  %v1575 = vsub.f32 %v316, %v604
  %v1576 = vsub.f32 %v335, %v623
  %v1577 = vsub.f32 %v354, %v642
  %v1578 = vsub.f32 %v373, %v661
  %v1579 = vsub.f32 %v392, %v680
  %v1580 = vsub.f32 %v411, %v699
  %v1581 = vmul.f32 %v1573, %v1421
  %v1582 = vmul.f32 %v1574, %v1430
  %v1583 = vmul.f32 %v1575, %v1439
  %v1584 = vmul.f32 %v1576, %v1448
  %v1585 = vmul.f32 %v1577, %v1457
  %v1586 = vmul.f32 %v1578, %v1466
  %v1587 = vmul.f32 %v1579, %v1475
  %v1588 = vmul.f32 %v1580, %v1484
  %vm1597 = vcmask 1041409
  %v1598 = vsel %vm1597, %v1582, %v1581
  %vm1599 = vcmask 1042434
  %v1600 = vsel %vm1599, %v1583, %v1598
  %vm1601 = vcmask 1043459
  %v1602 = vsel %vm1601, %v1584, %v1600
  %vm1603 = vcmask 1044484
  %v1604 = vsel %vm1603, %v1585, %v1602
  %vm1605 = vcmask 1045509
  %v1606 = vsel %vm1605, %v1586, %v1604
  %vm1607 = vcmask 1046534
  %v1608 = vsel %vm1607, %v1587, %v1606
  %vm1609 = vcmask 1047559
  %v1610 = vsel %vm1609, %v1588, %v1608
  %v1612 = vsel %vm258, %v1610, 0.0
  %1613 = vadd.xlane.f32.xlu0 %v1612
  %v1614 = vpop.xlane.xlu0 %1613
  %v1615 = vadd.f32 %v278, %v1509
  %v1616 = vadd.f32 %v297, %v1518
  %v1617 = vadd.f32 %v316, %v1527
  %v1618 = vadd.f32 %v335, %v1536
  %v1619 = vadd.f32 %v354, %v1545
  %v1620 = vadd.f32 %v373, %v1554
  %v1621 = vadd.f32 %v392, %v1563
  %v1622 = vadd.f32 %v411, %v1572
  %v1623 = vsub.f32 %v1615, %v566
  %v1624 = vsub.f32 %v1616, %v585
  %v1625 = vsub.f32 %v1617, %v604
  %v1626 = vsub.f32 %v1618, %v623
  %v1627 = vsub.f32 %v1619, %v642
  %v1628 = vsub.f32 %v1620, %v661
  %v1629 = vsub.f32 %v1621, %v680
  %v1630 = vsub.f32 %v1622, %v699
  %v1632 = vrot.slane %v1614, 1
  %v1633 = vrot.slane %v1614, 2
  %v1634 = vrot.slane %v1614, 3
  %v1635 = vrot.slane %v1614, 4
  %v1636 = vrot.slane %v1614, 5
  %v1637 = vrot.slane %v1614, 6
  %v1638 = vrot.slane %v1614, 7
  %v1647 = vmul.f32 %v1421, %v1614
  %v1648 = vmul.f32 %v1430, %v1632
  %v1649 = vmul.f32 %v1439, %v1633
  %v1650 = vmul.f32 %v1448, %v1634
  %v1651 = vmul.f32 %v1457, %v1635
  %v1652 = vmul.f32 %v1466, %v1636
  %v1653 = vmul.f32 %v1475, %v1637
  %v1654 = vmul.f32 %v1484, %v1638
  %v1655 = vsub.f32 %v1623, %v1647
  %v1656 = vsub.f32 %v1624, %v1648
  %v1657 = vsub.f32 %v1625, %v1649
  %v1658 = vsub.f32 %v1626, %v1650
  %v1659 = vsub.f32 %v1627, %v1651
  %v1660 = vsub.f32 %v1628, %v1652
  %v1661 = vsub.f32 %v1629, %v1653
  %v1662 = vsub.f32 %v1630, %v1654
  %v1663 = vmul.f32 %v1655, %v1655
  %v1664 = vmul.f32 %v1656, %v1656
  %v1665 = vmul.f32 %v1657, %v1657
  %v1666 = vmul.f32 %v1658, %v1658
  %v1667 = vmul.f32 %v1659, %v1659
  %v1668 = vmul.f32 %v1660, %v1660
  %v1669 = vmul.f32 %v1661, %v1661
  %v1670 = vmul.f32 %v1662, %v1662
  %v1679 = vrot.slane %v1664, 7
  %v1680 = vsel %vm1597, %v1679, %v1663
  %v1681 = vrot.slane %v1665, 6
  %v1682 = vsel %vm1599, %v1681, %v1680
  %v1683 = vrot.slane %v1666, 5
  %v1684 = vsel %vm1601, %v1683, %v1682
  %v1685 = vrot.slane %v1667, 4
  %v1686 = vsel %vm1603, %v1685, %v1684
  %v1687 = vrot.slane %v1668, 3
  %v1688 = vsel %vm1605, %v1687, %v1686
  %v1689 = vrot.slane %v1669, 2
  %v1690 = vsel %vm1607, %v1689, %v1688
  %v1691 = vrot.slane %v1670, 1
  %v1692 = vsel %vm1609, %v1691, %v1690
  %v1694 = vsel %vm258, %v1692, 0.0
  %1695 = vadd.xlane.f32.xlu0 %v1694
  %v1696 = vpop.xlane.xlu0 %1695
  %v1697 = vrsqrt.pop %v1696
  %v1698 = vmul.f32 %v1696, %v1697
  %vm1699 = vcmp.eq.f32.partialorder %v1696, inf
  %v1700 = vsel %vm1699, %v1696, %v1698
  %vm1701 = vcmp.eq.f32.partialorder %v1696, 0.0
  %v1702 = vand.u32 %v1696, 2147483648
  %v1703 = vsel %vm1701, %v1702, %v1700
  %v1704 = vsub.f32 %v935, %v1223
  %v1705 = vsub.f32 %v954, %v1242
  %v1706 = vsub.f32 %v973, %v1261
  %v1707 = vsub.f32 %v992, %v1280
  %v1708 = vsub.f32 %v1011, %v1299
  %v1709 = vsub.f32 %v1030, %v1318
  %v1710 = vsub.f32 %v1049, %v1337
  %v1711 = vsub.f32 %v1068, %v1356
  %v1712 = vmul.f32 %v1704, %v1421
  %v1713 = vmul.f32 %v1705, %v1430
  %v1714 = vmul.f32 %v1706, %v1439
  %v1715 = vmul.f32 %v1707, %v1448
  %v1716 = vmul.f32 %v1708, %v1457
  %v1717 = vmul.f32 %v1709, %v1466
  %v1718 = vmul.f32 %v1710, %v1475
  %v1719 = vmul.f32 %v1711, %v1484
  %v1728 = vsel %vm1597, %v1713, %v1712
  %v1729 = vsel %vm1599, %v1714, %v1728
  %v1730 = vsel %vm1601, %v1715, %v1729
  %v1731 = vsel %vm1603, %v1716, %v1730
  %v1732 = vsel %vm1605, %v1717, %v1731
  %v1733 = vsel %vm1607, %v1718, %v1732
  %v1734 = vsel %vm1609, %v1719, %v1733
  %v1736 = vsel %vm258, %v1734, 0.0
  %1737 = vadd.xlane.f32.xlu0 %v1736
  %v1738 = vpop.xlane.xlu0 %1737
  %v1739 = vadd.f32 %v935, %v1509
  %v1740 = vadd.f32 %v954, %v1518
  %v1741 = vadd.f32 %v973, %v1527
  %v1742 = vadd.f32 %v992, %v1536
  %v1743 = vadd.f32 %v1011, %v1545
  %v1744 = vadd.f32 %v1030, %v1554
  %v1745 = vadd.f32 %v1049, %v1563
  %v1746 = vadd.f32 %v1068, %v1572
  %v1747 = vsub.f32 %v1739, %v1223
  %v1748 = vsub.f32 %v1740, %v1242
  %v1749 = vsub.f32 %v1741, %v1261
  %v1750 = vsub.f32 %v1742, %v1280
  %v1751 = vsub.f32 %v1743, %v1299
  %v1752 = vsub.f32 %v1744, %v1318
  %v1753 = vsub.f32 %v1745, %v1337
  %v1754 = vsub.f32 %v1746, %v1356
  %v1756 = vrot.slane %v1738, 1
  %v1757 = vrot.slane %v1738, 2
  %v1758 = vrot.slane %v1738, 3
  %v1759 = vrot.slane %v1738, 4
  %v1760 = vrot.slane %v1738, 5
  %v1761 = vrot.slane %v1738, 6
  %v1762 = vrot.slane %v1738, 7
  %v1771 = vmul.f32 %v1421, %v1738
  %v1772 = vmul.f32 %v1430, %v1756
  %v1773 = vmul.f32 %v1439, %v1757
  %v1774 = vmul.f32 %v1448, %v1758
  %v1775 = vmul.f32 %v1457, %v1759
  %v1776 = vmul.f32 %v1466, %v1760
  %v1777 = vmul.f32 %v1475, %v1761
  %v1778 = vmul.f32 %v1484, %v1762
  %v1779 = vsub.f32 %v1747, %v1771
  %v1780 = vsub.f32 %v1748, %v1772
  %v1781 = vsub.f32 %v1749, %v1773
  %v1782 = vsub.f32 %v1750, %v1774
  %v1783 = vsub.f32 %v1751, %v1775
  %v1784 = vsub.f32 %v1752, %v1776
  %v1785 = vsub.f32 %v1753, %v1777
  %v1786 = vsub.f32 %v1754, %v1778
  %v1787 = vmul.f32 %v1779, %v1779
  %v1788 = vmul.f32 %v1780, %v1780
  %v1789 = vmul.f32 %v1781, %v1781
  %v1790 = vmul.f32 %v1782, %v1782
  %v1791 = vmul.f32 %v1783, %v1783
  %v1792 = vmul.f32 %v1784, %v1784
  %v1793 = vmul.f32 %v1785, %v1785
  %v1794 = vmul.f32 %v1786, %v1786
  %v1803 = vrot.slane %v1788, 7
  %v1804 = vsel %vm1597, %v1803, %v1787
  %v1805 = vrot.slane %v1789, 6
  %v1806 = vsel %vm1599, %v1805, %v1804
  %v1807 = vrot.slane %v1790, 5
  %v1808 = vsel %vm1601, %v1807, %v1806
  %v1809 = vrot.slane %v1791, 4
  %v1810 = vsel %vm1603, %v1809, %v1808
  %v1811 = vrot.slane %v1792, 3
  %v1812 = vsel %vm1605, %v1811, %v1810
  %v1813 = vrot.slane %v1793, 2
  %v1814 = vsel %vm1607, %v1813, %v1812
  %v1815 = vrot.slane %v1794, 1
  %v1816 = vsel %vm1609, %v1815, %v1814
  %v1818 = vsel %vm258, %v1816, 0.0
  %1819 = vadd.xlane.f32.xlu0 %v1818
  %v1820 = vpop.xlane.xlu0 %1819
  %v1821 = vrsqrt.pop %v1820
  %v1822 = vmul.f32 %v1820, %v1821
  %vm1823 = vcmp.eq.f32.partialorder %v1820, inf
  %v1824 = vsel %vm1823, %v1820, %v1822
  %vm1825 = vcmp.eq.f32.partialorder %v1820, 0.0
  %v1826 = vand.u32 %v1820, 2147483648
  %v1827 = vsel %vm1825, %v1826, %v1824
  %v1828 = vsub.f32 %v1703, %v1827
  %v1829 = vadd.f32 %v1828, 1.0
  %v1830 = vmax.f32 %v1829, 0.0
  %v1831 = vmul.f32 %v278, %v278
  %v1832 = vmul.f32 %v297, %v297
  %v1833 = vmul.f32 %v316, %v316
  %v1834 = vmul.f32 %v335, %v335
  %v1835 = vmul.f32 %v354, %v354
  %v1836 = vmul.f32 %v373, %v373
  %v1837 = vmul.f32 %v392, %v392
  %v1838 = vmul.f32 %v411, %v411
  %v1847 = vsel %vm1597, %v1832, %v1831
  %v1848 = vsel %vm1599, %v1833, %v1847
  %v1849 = vsel %vm1601, %v1834, %v1848
  %v1850 = vsel %vm1603, %v1835, %v1849
  %v1851 = vsel %vm1605, %v1836, %v1850
  %v1852 = vsel %vm1607, %v1837, %v1851
  %v1853 = vsel %vm1609, %v1838, %v1852
  %v1855 = vsel %vm258, %v1853, 0.0
  %1856 = vadd.xlane.f32.xlu0 %v1855
  %v1857 = vpop.xlane.xlu0 %1856
  %v1858 = vsub.f32 %v1857, 1.0
  %v1859 = vmax.f32 %v1858, 0.0
  %v1860 = vmul.f32 %v1859, 0.25
  %v1861 = vmul.f32 %v566, %v566
  %v1862 = vmul.f32 %v585, %v585
  %v1863 = vmul.f32 %v604, %v604
  %v1864 = vmul.f32 %v623, %v623
  %v1865 = vmul.f32 %v642, %v642
  %v1866 = vmul.f32 %v661, %v661
  %v1867 = vmul.f32 %v680, %v680
  %v1868 = vmul.f32 %v699, %v699
  %v1877 = vsel %vm1597, %v1862, %v1861
  %v1878 = vsel %vm1599, %v1863, %v1877
  %v1879 = vsel %vm1601, %v1864, %v1878
  %v1880 = vsel %vm1603, %v1865, %v1879
  %v1881 = vsel %vm1605, %v1866, %v1880
  %v1882 = vsel %vm1607, %v1867, %v1881
  %v1883 = vsel %vm1609, %v1868, %v1882
  %v1885 = vsel %vm258, %v1883, 0.0
  %1886 = vadd.xlane.f32.xlu0 %v1885
  %v1887 = vpop.xlane.xlu0 %1886
  %v1888 = vsub.f32 %v1887, 1.0
  %v1889 = vmax.f32 %v1888, 0.0
  %v1890 = vmul.f32 %v1889, 0.25
  %v1891 = vmul.f32 %v1421, %v1509
  %v1892 = vmul.f32 %v1430, %v1518
  %v1893 = vmul.f32 %v1439, %v1527
  %v1894 = vmul.f32 %v1448, %v1536
  %v1895 = vmul.f32 %v1457, %v1545
  %v1896 = vmul.f32 %v1466, %v1554
  %v1897 = vmul.f32 %v1475, %v1563
  %v1898 = vmul.f32 %v1484, %v1572
  %v1907 = vsel %vm1597, %v1892, %v1891
  %v1908 = vsel %vm1599, %v1893, %v1907
  %v1909 = vsel %vm1601, %v1894, %v1908
  %v1910 = vsel %vm1603, %v1895, %v1909
  %v1911 = vsel %vm1605, %v1896, %v1910
  %v1912 = vsel %vm1607, %v1897, %v1911
  %v1913 = vsel %vm1609, %v1898, %v1912
  %v1915 = vsel %vm258, %v1913, 0.0
  %1916 = vadd.xlane.f32.xlu0 %v1915
  %v1917 = vpop.xlane.xlu0 %1916
  %v1918 = vmul.f32 %v1509, %v1509
  %v1919 = vmul.f32 %v1518, %v1518
  %v1920 = vmul.f32 %v1527, %v1527
  %v1921 = vmul.f32 %v1536, %v1536
  %v1922 = vmul.f32 %v1545, %v1545
  %v1923 = vmul.f32 %v1554, %v1554
  %v1924 = vmul.f32 %v1563, %v1563
  %v1925 = vmul.f32 %v1572, %v1572
  %v1934 = vsel %vm1597, %v1919, %v1918
  %v1935 = vsel %vm1599, %v1920, %v1934
  %v1936 = vsel %vm1601, %v1921, %v1935
  %v1937 = vsel %vm1603, %v1922, %v1936
  %v1938 = vsel %vm1605, %v1923, %v1937
  %v1939 = vsel %vm1607, %v1924, %v1938
  %v1940 = vsel %vm1609, %v1925, %v1939
  %v1942 = vsel %vm258, %v1940, 0.0
  %1943 = vadd.xlane.f32.xlu0 %v1942
  %v1944 = vpop.xlane.xlu0 %1943
  %v1945 = vmul.f32 %v1917, %v1917
  %v1946 = vrcp.pop %v1944
  %v1947 = vmul.f32 %v1945, %v1946
  %v1948 = vsub.f32 %v1947, 0.0001
  %v1949 = vmax.f32 %v1948, 0.0
  %v1950 = vmul.f32 %v1949, 0.25
  %v1951 = vadd.f32 %v1830, %v1860
  %v1952 = vadd.f32 %v1951, %v1890
  %v1953 = vadd.f32 %v1952, %v1950
  %v1954 = vlaneseq
  %v1955 = vand.u32 %v1954, 127
  %vm1956 = vcmp.eq.s32.totalorder %v1955, 0
  %v1957 = vsel %vm1956, %v1953, 0.0
  %vm1958 = vcmp.eq.s32.totalorder %v1955, 1
  %v1959 = vsel %vm1958, %v1703, 0.0
  %v1960 = vadd.f32 %v1957, %v1959
  %vm1961 = vcmp.eq.s32.totalorder %v1955, 2
  %v1962 = vsel %vm1961, %v1827, 0.0
  %v1963 = vadd.f32 %v1960, %v1962
  %1964 = vst [vmem:[%s5] sm:$0xff] %v1963
  // Predicated region
  $region22: #{transh_forward.1} parent=0 // pred_check
    _
  $region23: #{transh_forward.1} parent=0 // pred_check_branch
    %1966 = sbr.rel (0) target = $region25
  $region24: #{transh_forward.1} parent=0 // pred_region
    _
  $region25: #{transh_forward.1} parent=0 // pred_fallthru
    _
  // Predicated region
  $region26: #{transh_forward.1} parent=0 // pred_check
    _
  $region27: #{transh_forward.1} parent=0 // pred_check_branch
    %1968 = sbr.rel (0) target = $region29
  $region28: #{transh_forward.1} parent=0 // pred_region
    _
  $region29: #{transh_forward.1} parent=0 // pred_fallthru
    _

</llo_original>
